<compile_context>
chip_gen: v7x
topology: tpu7x:2x2x1
jax: 0.10.0
libtpu: 0.0.40
codegen_flags: <defaults>
</compile_context>

<pallas_src>
import math

import jax
import jax.numpy as jnp
from jax import lax
from jax.experimental import pallas as pl
from jax.experimental.pallas import tpu as pltpu


def _matern_kernel(params_ref, x_ref, x2t_ref, o_ref):
    # params_ref lives in SMEM (scalar prefetch): [combined, scale]
    #   combined = const_item / length_scale**2   (length-scale folded in)
    combined = params_ref[0]
    scale = params_ref[1]

    # Fold the scalar into the small (tm, D) operand: tm*D VPU multiplies
    # instead of tm*tn on the distance tile.
    x = x_ref[...] * combined

    # NN contraction against the pre-transposed (D, tn) X2 tile: feeds the MXU
    # directly, no per-tile transpose on the XLU.
    distance = lax.dot_general(
        x, x2t_ref[...],
        dimension_numbers=(((1,), (0,)), ((), ())),
        preferred_element_type=jnp.float32,
    )                                                   # (tm, tn), f32

    # Elementwise epilogue: VPU mul/add + EUP exp; cast only at the store so a
    # bf16 output halves HBM write traffic while keeping f32 math.
    k = scale * (1.0 + distance) * jnp.exp(-distance)
    o_ref[...] = k.astype(o_ref.dtype)


def _round_up(x, m):
    return ((x + m - 1) // m) * m


def matern_forward(X, X2, log_length_scale, log_scale, *, noise_exp_format=True,
                   const_item=math.sqrt(3.0), tm=512, tn=1024, out_dtype=None):
    """X: (N, D), X2: (M, D) -> (N, M) kernel matrix (module semantics).

    out_dtype=jnp.bfloat16 is recommended when the caller tolerates it: the
    N*M output write dominates HBM traffic for small D, so halving it is close
    to a 2x wall-clock win in the memory-bound regime.
    """
    N, D = X.shape
    M, D2 = X2.shape
    assert D == D2, "feature dims must match"
    if out_dtype is None:
        out_dtype = X.dtype

    # Parameter setup (glue, plain traced JAX): exp() for the log-parametrization
    # and folding of length_scale into a single scalar multiplier.
    if noise_exp_format:
        length_scale = jnp.exp(log_length_scale)
        scale = jnp.exp(log_scale)
    else:
        length_scale = log_length_scale
        scale = log_scale
    combined = jnp.asarray(const_item, jnp.float32) / (length_scale * length_scale)
    params = jnp.stack([jnp.asarray(combined, jnp.float32),
                        jnp.asarray(scale, jnp.float32)])          # (2,) -> SMEM

    x = X.astype(jnp.float32)
    x2t = X2.astype(jnp.float32).T       # one-time (M, D) -> (D, M) transpose

    # Tiles: rows sublane-aligned (x8), columns lane-dense (x128).  Ragged last
    # blocks are handled by Pallas (masked edge writeback), so no host-side
    # padding or output slicing is needed.
    tm_eff = min(tm, _round_up(N, 8))
    tn_eff = min(tn, _round_up(M, 128))
    grid = (pl.cdiv(N, tm_eff), pl.cdiv(M, tn_eff))

    grid_spec = pltpu.PrefetchScalarGridSpec(
        num_scalar_prefetch=1,
        grid=grid,
        in_specs=[
            pl.BlockSpec((tm_eff, D), lambda i, j, p: (i, 0)),     # X row tile
            pl.BlockSpec((D, tn_eff), lambda i, j, p: (0, j)),     # X2^T col tile
        ],
        out_specs=pl.BlockSpec((tm_eff, tn_eff), lambda i, j, p: (i, j)),
    )

    out_bytes = jnp.dtype(out_dtype).itemsize
    n_row_blocks = grid[0]
    cost = pl.CostEstimate(
        flops=2 * N * M * D + 4 * N * M,
        transcendentals=N * M,
        bytes_accessed=4 * (N * D + n_row_blocks * M * D) + out_bytes * N * M,
    )

    # Per-step VMEM footprint (double-buffered inputs/output + f32 epilogue
    # temps), with headroom; clamped so it fits every generation (v5e default
    # scoped 16 MiB, v7x physical 64 MiB).
    vmem_est = (
        2 * tm_eff * D * 4
        + 2 * D * tn_eff * 4
        + 2 * tm_eff * tn_eff * out_bytes
        + 3 * tm_eff * tn_eff * 4
    )
    vmem_limit = min(max((vmem_est * 3) // 2, 32 << 20), 64 << 20)

    out = pl.pallas_call(
        _matern_kernel,
        out_shape=jax.ShapeDtypeStruct((N, M), out_dtype),
        grid_spec=grid_spec,
        compiler_params=pltpu.CompilerParams(
            dimension_semantics=("parallel", "parallel"),
            vmem_limit_bytes=vmem_limit,
        ),
        cost_estimate=cost,
    )(params, x, x2t)
    return out


def matern_reference(X, X2, log_length_scale, log_scale, *, noise_exp_format=True,
                     const_item=math.sqrt(3.0)):
    if noise_exp_format:
        length_scale = jnp.exp(log_length_scale)
        scale = jnp.exp(log_scale)
    else:
        length_scale = log_length_scale
        scale = log_scale
    Xs = X / length_scale
    X2s = X2 / length_scale
    distance = const_item * (Xs @ X2s.T)
    return scale * (1.0 + distance) * jnp.exp(-distance)


if __name__ == "__main__":
    key = jax.random.PRNGKey(0)
    k1, k2 = jax.random.split(key)

    # Small, non-tile-aligned shapes (exercise the ragged / masked-edge path).
    N, M, D = 384, 320, 32
    X = jax.random.normal(k1, (N, D), dtype=jnp.float32)
    X2 = jax.random.normal(k2, (M, D), dtype=jnp.float32)

    # Module defaults stored as log(.) since noise_exp_format=True; non-unit
    # values so the folded length-scale path is actually exercised.
    log_length_scale = jnp.log(jnp.float32(1.5))
    log_scale = jnp.log(jnp.float32(0.8))

    ref = matern_reference(X, X2, log_length_scale, log_scale)

    # 1) Default (large) tiles, f32 output.
    out = matern_forward(X, X2, log_length_scale, log_scale)
    out = jax.block_until_ready(out)
    assert out.shape == (N, M)
    # exp(-distance) amplifies relative error by |distance|; rtol sized for f32.
    assert jnp.allclose(out, ref, atol=1e-4, rtol=1e-3), "mismatch (f32 out)"

    # 2) bf16 output (halves the dominant HBM write); math stays f32 in-kernel.
    out_bf16 = matern_forward(X, X2, log_length_scale, log_scale,
                              out_dtype=jnp.bfloat16)
    out_bf16 = jax.block_until_ready(out_bf16)
    assert jnp.allclose(out_bf16.astype(jnp.float32), ref,
                        atol=1e-3, rtol=1e-2), "mismatch (bf16 out)"

    # 3) Small explicit tiles purely as a correctness check of the multi-block
    #    ragged-grid path (perf runs should keep the large defaults).
    out_small = matern_forward(X, X2, log_length_scale, log_scale, tm=128, tn=128)
    out_small = jax.block_until_ready(out_small)
    assert jnp.allclose(out_small, ref, atol=1e-4, rtol=1e-3), "mismatch (small tiles)"

    print("KERNEL_OK")
</pallas_src>

<mosaic_0001>
module attributes {stable_mosaic.version = 11 : i64} {
  func.func @_matern_kernel(%arg0: i32, %arg1: i32, %arg2: memref<2xf32, #tpu.memory_space<smem>>, %arg3: memref<384x32xf32, #tpu.memory_space<vmem>>, %arg4: memref<32x384xf32, #tpu.memory_space<vmem>>, %arg5: memref<384x384xf32, #tpu.memory_space<vmem>>) attributes {dimension_semantics = [#tpu.dimension_semantics<parallel>, #tpu.dimension_semantics<parallel>], iteration_bounds = array<i64: 1, 1>, scalar_prefetch = 1 : i64, scratch_operands = 0 : i64, tpu.core_type = #tpu.core_type<tc>, window_params = [{transform_indices = @transform_0, window_bounds = array<i64: 384, 32>}, {transform_indices = @transform_1, window_bounds = array<i64: 32, 384>}, {transform_indices = @transform_2, window_bounds = array<i64: 384, 384>}]} {
    %c0 = arith.constant 0 : index
    %0 = memref.load %arg2[%c0] : memref<2xf32, #tpu.memory_space<smem>>
    %c1 = arith.constant 1 : index
    %1 = memref.load %arg2[%c1] : memref<2xf32, #tpu.memory_space<smem>>
    %c0_0 = arith.constant 0 : index
    %c0_1 = arith.constant 0 : index
    %2 = vector.load %arg3[%c0_0, %c0_1] : memref<384x32xf32, #tpu.memory_space<vmem>>, vector<384x32xf32>
    %3 = vector.broadcast %0 : f32 to vector<384x32xf32>
    %4 = arith.mulf %2, %3 : vector<384x32xf32>
    %c0_2 = arith.constant 0 : index
    %c0_3 = arith.constant 0 : index
    %5 = vector.load %arg4[%c0_2, %c0_3] : memref<32x384xf32, #tpu.memory_space<vmem>>, vector<32x384xf32>
    %cst = arith.constant dense<0.000000e+00> : vector<384x384xf32>
    %6 = tpu.matmul %4, %5, %cst {dimension_numbers = #tpu.dot_dimension_numbers<[1], [0], [0], [1], [0, 0, 1, 1], [], []>} : vector<384x32xf32>, vector<32x384xf32>, vector<384x384xf32> -> vector<384x384xf32>
    %cst_4 = arith.constant 1.000000e+00 : f32
    %7 = vector.broadcast %cst_4 : f32 to vector<384x384xf32>
    %8 = arith.addf %7, %6 : vector<384x384xf32>
    %9 = vector.broadcast %1 : f32 to vector<384x384xf32>
    %10 = arith.mulf %9, %8 : vector<384x384xf32>
    %cst_5 = arith.constant 0.000000e+00 : f32
    %11 = vector.broadcast %cst_5 : f32 to vector<384x384xf32>
    %12 = arith.subf %11, %6 : vector<384x384xf32>
    %13 = math.exp %12 : vector<384x384xf32>
    %14 = arith.mulf %10, %13 : vector<384x384xf32>
    %c0_6 = arith.constant 0 : index
    %c0_7 = arith.constant 0 : index
    %15 = vector.load %arg5[%c0_6, %c0_7] : memref<384x384xf32, #tpu.memory_space<vmem>>, vector<384x384xf32>
    tpu.vector_store %arg5[%c0_6, %c0_7], %14 {strides = array<i32>} : memref<384x384xf32, #tpu.memory_space<vmem>>, vector<384x384xf32>,
    return
  }
  func.func @transform_0(%arg0: i32, %arg1: i32, %arg2: memref<2xf32, #tpu.memory_space<smem>>) -> (i32, i32) {
    %c0_i32 = arith.constant 0 : i32
    %c0_i32_0 = arith.constant 0 : i32
    return %arg0, %c0_i32 : i32, i32
  }
  func.func @transform_1(%arg0: i32, %arg1: i32, %arg2: memref<2xf32, #tpu.memory_space<smem>>) -> (i32, i32) {
    %c0_i32 = arith.constant 0 : i32
    %c0_i32_0 = arith.constant 0 : i32
    return %c0_i32, %arg1 : i32, i32
  }
  func.func @transform_2(%arg0: i32, %arg1: i32, %arg2: memref<2xf32, #tpu.memory_space<smem>>) -> (i32, i32) {
    %c0_i32 = arith.constant 0 : i32
    return %arg0, %arg1 : i32, i32
  }
}

</mosaic_0001>

<llo_original>
// kernel: tpu_custom_call.1
$region0: #{tpu_custom_call.1}
  #allocation0 [shape = 'u32[]', space=smem, size = 0x4, offset = 0x4, fixed_abs, tag = 'smem constant byte address 0x4 - core index']
  #allocation1 [shape = 'u32[144,128]{1,0:T(1,128)}', space=vmem, size = 0x12000, scoped, tag = 'internal scratch']
  #allocation2 [shape = 's32[1]{0}', space=sflag, size = 0x4, scoped, tag = 'scoped memory for tpu_custom_call.1']
  #allocation3 [shape = 'u8[512]{0}', space=smem, size = 0x200, scoped, tag = 'prefetched SMEM operand 0']
  %s0 = inlined_call_operand.vmem [shape: f32[2], index: 0, kind: input, shape index: {}]
  %s1 = inlined_call_operand.vmem [shape: f32[384,32], index: 1, kind: input, shape index: {}]
  %s2 = inlined_call_operand.vmem [shape: f32[32,320], index: 2, kind: input, shape index: {}]
  %s3 = inlined_call_operand.vmem [shape: f32[384,320], index: 3, kind: output, shape index: {}]
  %s4 = sld [smem:[#allocation0]]
  $region18: #{tpu_custom_call.1} parent=0
    _
  %s6 = ssub.s32 1, %s4
  %s7 = scalar_select 0, %s6, %s4
  %s8 = sshll.u32 %s0, 4
  %s9 = int_to_ptr.vmem [resolvable:$true] %s8
  %11 = dma.vmem_to_smem %s9, 16, [#allocation3], [#allocation2]
  %12 = dma.done [#allocation2], 16
  %13 = sfence
  // Predicated region
  $region2: #{tpu_custom_call.1} parent=0 // pred_check
    _
  $region3: #{tpu_custom_call.1} parent=0 // pred_check_branch
    %15 = sbr.rel (0) target = $region5
  $region4: #{tpu_custom_call.1} parent=0 // pred_region
    _
  $region5: #{tpu_custom_call.1} parent=0 // pred_fallthru
    _
  // Predicated region
  $region6: #{tpu_custom_call.1} parent=0 // pred_check
    _
  $region7: #{tpu_custom_call.1} parent=0 // pred_check_branch
    %17 = sbr.rel (0) target = $region9
  $region8: #{tpu_custom_call.1} parent=0 // pred_region
    _
  $region9: #{tpu_custom_call.1} parent=0 // pred_fallthru
    _
  %s18 = sld [smem:[#allocation3]]
  %s19 = sld [smem:[#allocation3 + $0x1]]
  %v20 = vld [vmem:[%s1] sm:$0xff]
  %v21 = vld [vmem:[%s1 + $0x8] sm:$0xff]
  %v22 = vld [vmem:[%s1 + $0x10] sm:$0xff]
  %v23 = vld [vmem:[%s1 + $0x18] sm:$0xff]
  %v24 = vld [vmem:[%s1 + $0x20] sm:$0xff]
  %v25 = vld [vmem:[%s1 + $0x28] sm:$0xff]
  %v26 = vld [vmem:[%s1 + $0x30] sm:$0xff]
  %v27 = vld [vmem:[%s1 + $0x38] sm:$0xff]
  %v28 = vld [vmem:[%s1 + $0x40] sm:$0xff]
  %v29 = vld [vmem:[%s1 + $0x48] sm:$0xff]
  %v30 = vld [vmem:[%s1 + $0x50] sm:$0xff]
  %v31 = vld [vmem:[%s1 + $0x58] sm:$0xff]
  %v32 = vld [vmem:[%s1 + $0x60] sm:$0xff]
  %v33 = vld [vmem:[%s1 + $0x68] sm:$0xff]
  %v34 = vld [vmem:[%s1 + $0x70] sm:$0xff]
  %v35 = vld [vmem:[%s1 + $0x78] sm:$0xff]
  %v36 = vld [vmem:[%s1 + $0x80] sm:$0xff]
  %v37 = vld [vmem:[%s1 + $0x88] sm:$0xff]
  %v38 = vld [vmem:[%s1 + $0x90] sm:$0xff]
  %v39 = vld [vmem:[%s1 + $0x98] sm:$0xff]
  %v40 = vld [vmem:[%s1 + $0xa0] sm:$0xff]
  %v41 = vld [vmem:[%s1 + $0xa8] sm:$0xff]
  %v42 = vld [vmem:[%s1 + $0xb0] sm:$0xff]
  %v43 = vld [vmem:[%s1 + $0xb8] sm:$0xff]
  %v44 = vld [vmem:[%s1 + $0xc0] sm:$0xff]
  %v45 = vld [vmem:[%s1 + $0xc8] sm:$0xff]
  %v46 = vld [vmem:[%s1 + $0xd0] sm:$0xff]
  %v47 = vld [vmem:[%s1 + $0xd8] sm:$0xff]
  %v48 = vld [vmem:[%s1 + $0xe0] sm:$0xff]
  %v49 = vld [vmem:[%s1 + $0xe8] sm:$0xff]
  %v50 = vld [vmem:[%s1 + $0xf0] sm:$0xff]
  %v51 = vld [vmem:[%s1 + $0xf8] sm:$0xff]
  %v52 = vld [vmem:[%s1 + $0x100] sm:$0xff]
  %v53 = vld [vmem:[%s1 + $0x108] sm:$0xff]
  %v54 = vld [vmem:[%s1 + $0x110] sm:$0xff]
  %v55 = vld [vmem:[%s1 + $0x118] sm:$0xff]
  %v56 = vld [vmem:[%s1 + $0x120] sm:$0xff]
  %v57 = vld [vmem:[%s1 + $0x128] sm:$0xff]
  %v58 = vld [vmem:[%s1 + $0x130] sm:$0xff]
  %v59 = vld [vmem:[%s1 + $0x138] sm:$0xff]
  %v60 = vld [vmem:[%s1 + $0x140] sm:$0xff]
  %v61 = vld [vmem:[%s1 + $0x148] sm:$0xff]
  %v62 = vld [vmem:[%s1 + $0x150] sm:$0xff]
  %v63 = vld [vmem:[%s1 + $0x158] sm:$0xff]
  %v64 = vld [vmem:[%s1 + $0x160] sm:$0xff]
  %v65 = vld [vmem:[%s1 + $0x168] sm:$0xff]
  %v66 = vld [vmem:[%s1 + $0x170] sm:$0xff]
  %v67 = vld [vmem:[%s1 + $0x178] sm:$0xff]
  %v68 = vstv %s18
  %v69 = vmul.f32 %v20, %v68
  %v70 = vmul.f32 %v21, %v68
  %v71 = vmul.f32 %v22, %v68
  %v72 = vmul.f32 %v23, %v68
  %v73 = vmul.f32 %v24, %v68
  %v74 = vmul.f32 %v25, %v68
  %v75 = vmul.f32 %v26, %v68
  %v76 = vmul.f32 %v27, %v68
  %v77 = vmul.f32 %v28, %v68
  %v78 = vmul.f32 %v29, %v68
  %v79 = vmul.f32 %v30, %v68
  %v80 = vmul.f32 %v31, %v68
  %v81 = vmul.f32 %v32, %v68
  %v82 = vmul.f32 %v33, %v68
  %v83 = vmul.f32 %v34, %v68
  %v84 = vmul.f32 %v35, %v68
  %v85 = vmul.f32 %v36, %v68
  %v86 = vmul.f32 %v37, %v68
  %v87 = vmul.f32 %v38, %v68
  %v88 = vmul.f32 %v39, %v68
  %v89 = vmul.f32 %v40, %v68
  %v90 = vmul.f32 %v41, %v68
  %v91 = vmul.f32 %v42, %v68
  %v92 = vmul.f32 %v43, %v68
  %v93 = vmul.f32 %v44, %v68
  %v94 = vmul.f32 %v45, %v68
  %v95 = vmul.f32 %v46, %v68
  %v96 = vmul.f32 %v47, %v68
  %v97 = vmul.f32 %v48, %v68
  %v98 = vmul.f32 %v49, %v68
  %v99 = vmul.f32 %v50, %v68
  %v100 = vmul.f32 %v51, %v68
  %v101 = vmul.f32 %v52, %v68
  %v102 = vmul.f32 %v53, %v68
  %v103 = vmul.f32 %v54, %v68
  %v104 = vmul.f32 %v55, %v68
  %v105 = vmul.f32 %v56, %v68
  %v106 = vmul.f32 %v57, %v68
  %v107 = vmul.f32 %v58, %v68
  %v108 = vmul.f32 %v59, %v68
  %v109 = vmul.f32 %v60, %v68
  %v110 = vmul.f32 %v61, %v68
  %v111 = vmul.f32 %v62, %v68
  %v112 = vmul.f32 %v63, %v68
  %v113 = vmul.f32 %v64, %v68
  %v114 = vmul.f32 %v65, %v68
  %v115 = vmul.f32 %v66, %v68
  %v116 = vmul.f32 %v67, %v68
  %v117 = vld [vmem:[%s2] sm:$0xff]
  %v118 = vld [vmem:[%s2 + $0x8] sm:$0xff]
  %v119 = vld [vmem:[%s2 + $0x10] sm:$0xff]
  %v120 = vld [vmem:[%s2 + $0x18] sm:$0xff]
  %v121 = vld [vmem:[%s2 + $0x20] sm:$0xff]
  %v122 = vld [vmem:[%s2 + $0x28] sm:$0xff]
  %v123 = vld [vmem:[%s2 + $0x30] sm:$0xff]
  %v124 = vld [vmem:[%s2 + $0x38] sm:$0xff]
  %v125 = vld [vmem:[%s2 + $0x40] sm:$0xff]
  %v126 = vld [vmem:[%s2 + $0x48] sm:$0xff]
  %v127 = vld [vmem:[%s2 + $0x50] sm:$0xff]
  %v128 = vld [vmem:[%s2 + $0x58] sm:$0xff]
  %vm129 = vcmask 261120
  %v131 = vsel %vm129, %v69, 0
  %v134 = vsel %vm129, %v70, 0
  %v137 = vsel %vm129, %v71, 0
  %v140 = vsel %vm129, %v72, 0
  %v143 = vsel %vm129, %v73, 0
  %v146 = vsel %vm129, %v74, 0
  %v149 = vsel %vm129, %v75, 0
  %v152 = vsel %vm129, %v76, 0
  %v155 = vsel %vm129, %v77, 0
  %v158 = vsel %vm129, %v78, 0
  %v161 = vsel %vm129, %v79, 0
  %v164 = vsel %vm129, %v80, 0
  %v167 = vsel %vm129, %v81, 0
  %v170 = vsel %vm129, %v82, 0
  %v173 = vsel %vm129, %v83, 0
  %v176 = vsel %vm129, %v84, 0
  %v179 = vsel %vm129, %v85, 0
  %v182 = vsel %vm129, %v86, 0
  %v185 = vsel %vm129, %v87, 0
  %v188 = vsel %vm129, %v88, 0
  %v191 = vsel %vm129, %v89, 0
  %v194 = vsel %vm129, %v90, 0
  %v197 = vsel %vm129, %v91, 0
  %v200 = vsel %vm129, %v92, 0
  %v203 = vsel %vm129, %v93, 0
  %v206 = vsel %vm129, %v94, 0
  %v209 = vsel %vm129, %v95, 0
  %v212 = vsel %vm129, %v96, 0
  %v215 = vsel %vm129, %v97, 0
  %v218 = vsel %vm129, %v98, 0
  %v221 = vsel %vm129, %v99, 0
  %v224 = vsel %vm129, %v100, 0
  %v227 = vsel %vm129, %v101, 0
  %v230 = vsel %vm129, %v102, 0
  %v233 = vsel %vm129, %v103, 0
  %v236 = vsel %vm129, %v104, 0
  %v239 = vsel %vm129, %v105, 0
  %v242 = vsel %vm129, %v106, 0
  %v245 = vsel %vm129, %v107, 0
  %v248 = vsel %vm129, %v108, 0
  %v251 = vsel %vm129, %v109, 0
  %v254 = vsel %vm129, %v110, 0
  %v257 = vsel %vm129, %v111, 0
  %v260 = vsel %vm129, %v112, 0
  %v263 = vsel %vm129, %v113, 0
  %v266 = vsel %vm129, %v114, 0
  %v269 = vsel %vm129, %v115, 0
  %v272 = vsel %vm129, %v116, 0
  %274 = vmatprep.subr.mxu0 %v118
  %275 = vmatpush1.msra.mxu0 %v117
  %276 = vmatprep.subr.mxu0 %v121
  %277 = vmatpush1.msra.mxu0 %v120
  %278 = vmatprep.subr.mxu0 %v124
  %279 = vmatpush1.msra.mxu0 %v123
  %280 = vmatprep.subr.mxu0 %v127
  %281 = vmatpush1.msra.mxu0 %v126
  %282 = vmatprep.subr.mxu0 0.0
  %283 = vmatpush1.msra.mxu0 0.0
  %284 = vmatprep.subr.mxu0 0.0
  %285 = vmatpush1.msra.mxu0 0.0
  %286 = vmatprep.subr.mxu0 0.0
  %287 = vmatpush1.msra.mxu0 0.0
  %288 = vmatprep.subr.mxu0 0.0
  %289 = vmatpush1.msra.mxu0 0.0
  %290 = vmatprep.subr.mxu0 0.0
  %291 = vmatpush1.msra.mxu0 0.0
  %292 = vmatprep.subr.mxu0 0.0
  %293 = vmatpush1.msra.mxu0 0.0
  %294 = vmatprep.subr.mxu0 0.0
  %295 = vmatpush1.msra.mxu0 0.0
  %296 = vmatprep.subr.mxu0 0.0
  %297 = vmatpush1.msra.mxu0 0.0
  %298 = vmatprep.subr.mxu0 0.0
  %299 = vmatpush1.msra.mxu0 0.0
  %300 = vmatprep.subr.mxu0 0.0
  %301 = vmatpush1.msra.mxu0 0.0
  %302 = vmatprep.subr.mxu0 0.0
  %303 = vmatpush1.msra.mxu0 0.0
  %304 = vmatprep.subr.mxu0 0.0
  %305 = vmatpush1.msra.mxu0 0.0
  %306 = vmatprep.subr.mxu0 0.0
  %307 = vmatpush1.msra.mxu0 0.0
  %308 = vmatprep.subr.mxu0 0.0
  %309 = vmatpush1.msra.mxu0 0.0
  %310 = vmatprep.subr.mxu0 0.0
  %311 = vmatpush1.msra.mxu0 0.0
  %312 = vmatprep.subr.mxu0 0.0
  %313 = vmatpush1.msra.mxu0 0.0
  %314 = vmatprep.subr.mxu0 0.0
  %315 = vmatpush1.msra.mxu0 0.0
  %316 = vmatprep.subr.mxu0 0.0
  %317 = vmatpush1.msra.mxu0 0.0
  %318 = vmatprep.subr.mxu0 0.0
  %319 = vmatpush1.msra.mxu0 0.0
  %320 = vmatprep.subr.mxu0 0.0
  %321 = vmatpush1.msra.mxu0 0.0
  %322 = vmatprep.subr.mxu0 0.0
  %323 = vmatpush1.msra.mxu0 0.0
  %324 = vmatprep.subr.mxu0 0.0
  %325 = vmatpush1.msra.mxu0 0.0
  %326 = vmatprep.subr.mxu0 0.0
  %327 = vmatpush1.msra.mxu0 0.0
  %328 = vmatprep.subr.mxu0 0.0
  %329 = vmatpush1.msra.mxu0 0.0
  %330 = vmatprep.subr.mxu0 0.0
  %331 = vmatpush1.msra.mxu0 0.0
  %332 = vmatprep.subr.mxu0 0.0
  %333 = vmatpush1.msra.mxu0 0.0
  %334 = vmatprep.subr.mxu0 0.0
  %335 = vmatpush1.msra.mxu0 0.0
  %336 = vmatprep.subr.mxu0 0.0
  %337 = vmatpush1.msra.mxu0 0.0
  %338 = vmatprep.mubr.f32.mxu0 0.0
  %339 = vmatmul.mubr.f32.gmra.mrb[0].mxu0 %v131
  %v340 = vpop.f32.mrb[0].mxu0
  %v341 = vadd.f32 0.0, %v340
  %v342 = vpop.f32.mrb[0].mxu0
  %v343 = vadd.f32 0.0, %v342
  %344 = vmatprep.mubr.f32.mxu0 0.0
  %345 = vmatmul.mubr.f32.gmra.mrb[0].mxu0 %v134
  %v346 = vpop.f32.mrb[0].mxu0
  %v347 = vadd.f32 0.0, %v346
  %v348 = vpop.f32.mrb[0].mxu0
  %v349 = vadd.f32 0.0, %v348
  %350 = vmatprep.mubr.f32.mxu0 0.0
  %351 = vmatmul.mubr.f32.gmra.mrb[0].mxu0 %v137
  %v352 = vpop.f32.mrb[0].mxu0
  %v353 = vadd.f32 0.0, %v352
  %v354 = vpop.f32.mrb[0].mxu0
  %v355 = vadd.f32 0.0, %v354
  %356 = vmatprep.mubr.f32.mxu0 0.0
  %357 = vmatmul.mubr.f32.gmra.mrb[0].mxu0 %v140
  %v358 = vpop.f32.mrb[0].mxu0
  %v359 = vadd.f32 0.0, %v358
  %v360 = vpop.f32.mrb[0].mxu0
  %v361 = vadd.f32 0.0, %v360
  %362 = vmatprep.mubr.f32.mxu0 0.0
  %363 = vmatmul.mubr.f32.gmra.mrb[0].mxu0 %v143
  %v364 = vpop.f32.mrb[0].mxu0
  %v365 = vadd.f32 0.0, %v364
  %v366 = vpop.f32.mrb[0].mxu0
  %v367 = vadd.f32 0.0, %v366
  %368 = vmatprep.mubr.f32.mxu0 0.0
  %369 = vmatmul.mubr.f32.gmra.mrb[0].mxu0 %v146
  %v370 = vpop.f32.mrb[0].mxu0
  %v371 = vadd.f32 0.0, %v370
  %v372 = vpop.f32.mrb[0].mxu0
  %v373 = vadd.f32 0.0, %v372
  %374 = vmatprep.mubr.f32.mxu0 0.0
  %375 = vmatmul.mubr.f32.gmra.mrb[0].mxu0 %v149
  %v376 = vpop.f32.mrb[0].mxu0
  %v377 = vadd.f32 0.0, %v376
  %v378 = vpop.f32.mrb[0].mxu0
  %v379 = vadd.f32 0.0, %v378
  %380 = vmatprep.mubr.f32.mxu0 0.0
  %381 = vmatmul.mubr.f32.gmra.mrb[0].mxu0 %v152
  %v382 = vpop.f32.mrb[0].mxu0
  %v383 = vadd.f32 0.0, %v382
  %v384 = vpop.f32.mrb[0].mxu0
  %v385 = vadd.f32 0.0, %v384
  %386 = vmatprep.mubr.f32.mxu0 0.0
  %387 = vmatmul.mubr.f32.gmra.mrb[0].mxu0 %v155
  %v388 = vpop.f32.mrb[0].mxu0
  %v389 = vadd.f32 0.0, %v388
  %v390 = vpop.f32.mrb[0].mxu0
  %v391 = vadd.f32 0.0, %v390
  %392 = vmatprep.mubr.f32.mxu0 0.0
  %393 = vmatmul.mubr.f32.gmra.mrb[0].mxu0 %v158
  %v394 = vpop.f32.mrb[0].mxu0
  %v395 = vadd.f32 0.0, %v394
  %v396 = vpop.f32.mrb[0].mxu0
  %v397 = vadd.f32 0.0, %v396
  %398 = vmatprep.mubr.f32.mxu0 0.0
  %399 = vmatmul.mubr.f32.gmra.mrb[0].mxu0 %v161
  %v400 = vpop.f32.mrb[0].mxu0
  %v401 = vadd.f32 0.0, %v400
  %v402 = vpop.f32.mrb[0].mxu0
  %v403 = vadd.f32 0.0, %v402
  %404 = vmatprep.mubr.f32.mxu0 0.0
  %405 = vmatmul.mubr.f32.gmra.mrb[0].mxu0 %v164
  %v406 = vpop.f32.mrb[0].mxu0
  %v407 = vadd.f32 0.0, %v406
  %v408 = vpop.f32.mrb[0].mxu0
  %v409 = vadd.f32 0.0, %v408
  %410 = vmatprep.mubr.f32.mxu0 0.0
  %411 = vmatmul.mubr.f32.gmra.mrb[0].mxu0 %v167
  %v412 = vpop.f32.mrb[0].mxu0
  %v413 = vadd.f32 0.0, %v412
  %v414 = vpop.f32.mrb[0].mxu0
  %v415 = vadd.f32 0.0, %v414
  %416 = vmatprep.mubr.f32.mxu0 0.0
  %417 = vmatmul.mubr.f32.gmra.mrb[0].mxu0 %v170
  %v418 = vpop.f32.mrb[0].mxu0
  %v419 = vadd.f32 0.0, %v418
  %v420 = vpop.f32.mrb[0].mxu0
  %v421 = vadd.f32 0.0, %v420
  %422 = vmatprep.mubr.f32.mxu0 0.0
  %423 = vmatmul.mubr.f32.gmra.mrb[0].mxu0 %v173
  %v424 = vpop.f32.mrb[0].mxu0
  %v425 = vadd.f32 0.0, %v424
  %v426 = vpop.f32.mrb[0].mxu0
  %v427 = vadd.f32 0.0, %v426
  %428 = vmatprep.mubr.f32.mxu0 0.0
  %429 = vmatmul.mubr.f32.gmra.mrb[0].mxu0 %v176
  %v430 = vpop.f32.mrb[0].mxu0
  %v431 = vadd.f32 0.0, %v430
  %v432 = vpop.f32.mrb[0].mxu0
  %v433 = vadd.f32 0.0, %v432
  %434 = vmatprep.mubr.f32.mxu0 0.0
  %435 = vmatmul.mubr.f32.gmra.mrb[0].mxu0 %v179
  %v436 = vpop.f32.mrb[0].mxu0
  %v437 = vadd.f32 0.0, %v436
  %v438 = vpop.f32.mrb[0].mxu0
  %v439 = vadd.f32 0.0, %v438
  %440 = vmatprep.mubr.f32.mxu0 0.0
  %441 = vmatmul.mubr.f32.gmra.mrb[0].mxu0 %v182
  %v442 = vpop.f32.mrb[0].mxu0
  %v443 = vadd.f32 0.0, %v442
  %v444 = vpop.f32.mrb[0].mxu0
  %v445 = vadd.f32 0.0, %v444
  %446 = vmatprep.mubr.f32.mxu0 0.0
  %447 = vmatmul.mubr.f32.gmra.mrb[0].mxu0 %v185
  %v448 = vpop.f32.mrb[0].mxu0
  %v449 = vadd.f32 0.0, %v448
  %v450 = vpop.f32.mrb[0].mxu0
  %v451 = vadd.f32 0.0, %v450
  %452 = vmatprep.mubr.f32.mxu0 0.0
  %453 = vmatmul.mubr.f32.gmra.mrb[0].mxu0 %v188
  %v454 = vpop.f32.mrb[0].mxu0
  %v455 = vadd.f32 0.0, %v454
  %v456 = vpop.f32.mrb[0].mxu0
  %v457 = vadd.f32 0.0, %v456
  %458 = vmatprep.mubr.f32.mxu0 0.0
  %459 = vmatmul.mubr.f32.gmra.mrb[0].mxu0 %v191
  %v460 = vpop.f32.mrb[0].mxu0
  %v461 = vadd.f32 0.0, %v460
  %v462 = vpop.f32.mrb[0].mxu0
  %v463 = vadd.f32 0.0, %v462
  %464 = vmatprep.mubr.f32.mxu0 0.0
  %465 = vmatmul.mubr.f32.gmra.mrb[0].mxu0 %v194
  %v466 = vpop.f32.mrb[0].mxu0
  %v467 = vadd.f32 0.0, %v466
  %v468 = vpop.f32.mrb[0].mxu0
  %v469 = vadd.f32 0.0, %v468
  %470 = vmatprep.mubr.f32.mxu0 0.0
  %471 = vmatmul.mubr.f32.gmra.mrb[0].mxu0 %v197
  %v472 = vpop.f32.mrb[0].mxu0
  %v473 = vadd.f32 0.0, %v472
  %v474 = vpop.f32.mrb[0].mxu0
  %v475 = vadd.f32 0.0, %v474
  %476 = vmatprep.mubr.f32.mxu0 0.0
  %477 = vmatmul.mubr.f32.gmra.mrb[0].mxu0 %v200
  %v478 = vpop.f32.mrb[0].mxu0
  %v479 = vadd.f32 0.0, %v478
  %v480 = vpop.f32.mrb[0].mxu0
  %v481 = vadd.f32 0.0, %v480
  %482 = vmatprep.mubr.f32.mxu0 0.0
  %483 = vmatmul.mubr.f32.gmra.mrb[0].mxu0 %v203
  %v484 = vpop.f32.mrb[0].mxu0
  %v485 = vadd.f32 0.0, %v484
  %v486 = vpop.f32.mrb[0].mxu0
  %v487 = vadd.f32 0.0, %v486
  %488 = vmatprep.mubr.f32.mxu0 0.0
  %489 = vmatmul.mubr.f32.gmra.mrb[0].mxu0 %v206
  %v490 = vpop.f32.mrb[0].mxu0
  %v491 = vadd.f32 0.0, %v490
  %v492 = vpop.f32.mrb[0].mxu0
  %v493 = vadd.f32 0.0, %v492
  %494 = vmatprep.mubr.f32.mxu0 0.0
  %495 = vmatmul.mubr.f32.gmra.mrb[0].mxu0 %v209
  %v496 = vpop.f32.mrb[0].mxu0
  %v497 = vadd.f32 0.0, %v496
  %v498 = vpop.f32.mrb[0].mxu0
  %v499 = vadd.f32 0.0, %v498
  %500 = vmatprep.mubr.f32.mxu0 0.0
  %501 = vmatmul.mubr.f32.gmra.mrb[0].mxu0 %v212
  %v502 = vpop.f32.mrb[0].mxu0
  %v503 = vadd.f32 0.0, %v502
  %v504 = vpop.f32.mrb[0].mxu0
  %v505 = vadd.f32 0.0, %v504
  %506 = vmatprep.mubr.f32.mxu0 0.0
  %507 = vmatmul.mubr.f32.gmra.mrb[0].mxu0 %v215
  %v508 = vpop.f32.mrb[0].mxu0
  %v509 = vadd.f32 0.0, %v508
  %v510 = vpop.f32.mrb[0].mxu0
  %v511 = vadd.f32 0.0, %v510
  %512 = vmatprep.mubr.f32.mxu0 0.0
  %513 = vmatmul.mubr.f32.gmra.mrb[0].mxu0 %v218
  %v514 = vpop.f32.mrb[0].mxu0
  %v515 = vadd.f32 0.0, %v514
  %v516 = vpop.f32.mrb[0].mxu0
  %v517 = vadd.f32 0.0, %v516
  %518 = vmatprep.mubr.f32.mxu0 0.0
  %519 = vmatmul.mubr.f32.gmra.mrb[0].mxu0 %v221
  %v520 = vpop.f32.mrb[0].mxu0
  %v521 = vadd.f32 0.0, %v520
  %v522 = vpop.f32.mrb[0].mxu0
  %v523 = vadd.f32 0.0, %v522
  %524 = vmatprep.mubr.f32.mxu0 0.0
  %525 = vmatmul.mubr.f32.gmra.mrb[0].mxu0 %v224
  %v526 = vpop.f32.mrb[0].mxu0
  %v527 = vadd.f32 0.0, %v526
  %v528 = vpop.f32.mrb[0].mxu0
  %v529 = vadd.f32 0.0, %v528
  %530 = vmatprep.mubr.f32.mxu0 0.0
  %531 = vmatmul.mubr.f32.gmra.mrb[0].mxu0 %v227
  %v532 = vpop.f32.mrb[0].mxu0
  %v533 = vadd.f32 0.0, %v532
  %v534 = vpop.f32.mrb[0].mxu0
  %v535 = vadd.f32 0.0, %v534
  %536 = vmatprep.mubr.f32.mxu0 0.0
  %537 = vmatmul.mubr.f32.gmra.mrb[0].mxu0 %v230
  %v538 = vpop.f32.mrb[0].mxu0
  %v539 = vadd.f32 0.0, %v538
  %v540 = vpop.f32.mrb[0].mxu0
  %v541 = vadd.f32 0.0, %v540
  %542 = vmatprep.mubr.f32.mxu0 0.0
  %543 = vmatmul.mubr.f32.gmra.mrb[0].mxu0 %v233
  %v544 = vpop.f32.mrb[0].mxu0
  %v545 = vadd.f32 0.0, %v544
  %v546 = vpop.f32.mrb[0].mxu0
  %v547 = vadd.f32 0.0, %v546
  %548 = vmatprep.mubr.f32.mxu0 0.0
  %549 = vmatmul.mubr.f32.gmra.mrb[0].mxu0 %v236
  %v550 = vpop.f32.mrb[0].mxu0
  %v551 = vadd.f32 0.0, %v550
  %v552 = vpop.f32.mrb[0].mxu0
  %v553 = vadd.f32 0.0, %v552
  %554 = vmatprep.mubr.f32.mxu0 0.0
  %555 = vmatmul.mubr.f32.gmra.mrb[0].mxu0 %v239
  %v556 = vpop.f32.mrb[0].mxu0
  %v557 = vadd.f32 0.0, %v556
  %v558 = vpop.f32.mrb[0].mxu0
  %v559 = vadd.f32 0.0, %v558
  %560 = vmatprep.mubr.f32.mxu0 0.0
  %561 = vmatmul.mubr.f32.gmra.mrb[0].mxu0 %v242
  %v562 = vpop.f32.mrb[0].mxu0
  %v563 = vadd.f32 0.0, %v562
  %v564 = vpop.f32.mrb[0].mxu0
  %v565 = vadd.f32 0.0, %v564
  %566 = vmatprep.mubr.f32.mxu0 0.0
  %567 = vmatmul.mubr.f32.gmra.mrb[0].mxu0 %v245
  %v568 = vpop.f32.mrb[0].mxu0
  %v569 = vadd.f32 0.0, %v568
  %v570 = vpop.f32.mrb[0].mxu0
  %v571 = vadd.f32 0.0, %v570
  %572 = vmatprep.mubr.f32.mxu0 0.0
  %573 = vmatmul.mubr.f32.gmra.mrb[0].mxu0 %v248
  %v574 = vpop.f32.mrb[0].mxu0
  %v575 = vadd.f32 0.0, %v574
  %v576 = vpop.f32.mrb[0].mxu0
  %v577 = vadd.f32 0.0, %v576
  %578 = vmatprep.mubr.f32.mxu0 0.0
  %579 = vmatmul.mubr.f32.gmra.mrb[0].mxu0 %v251
  %v580 = vpop.f32.mrb[0].mxu0
  %v581 = vadd.f32 0.0, %v580
  %v582 = vpop.f32.mrb[0].mxu0
  %v583 = vadd.f32 0.0, %v582
  %584 = vmatprep.mubr.f32.mxu0 0.0
  %585 = vmatmul.mubr.f32.gmra.mrb[0].mxu0 %v254
  %v586 = vpop.f32.mrb[0].mxu0
  %v587 = vadd.f32 0.0, %v586
  %v588 = vpop.f32.mrb[0].mxu0
  %v589 = vadd.f32 0.0, %v588
  %590 = vmatprep.mubr.f32.mxu0 0.0
  %591 = vmatmul.mubr.f32.gmra.mrb[0].mxu0 %v257
  %v592 = vpop.f32.mrb[0].mxu0
  %v593 = vadd.f32 0.0, %v592
  %v594 = vpop.f32.mrb[0].mxu0
  %v595 = vadd.f32 0.0, %v594
  %596 = vmatprep.mubr.f32.mxu0 0.0
  %597 = vmatmul.mubr.f32.gmra.mrb[0].mxu0 %v260
  %v598 = vpop.f32.mrb[0].mxu0
  %v599 = vadd.f32 0.0, %v598
  %v600 = vpop.f32.mrb[0].mxu0
  %v601 = vadd.f32 0.0, %v600
  %602 = vmatprep.mubr.f32.mxu0 0.0
  %603 = vmatmul.mubr.f32.gmra.mrb[0].mxu0 %v263
  %v604 = vpop.f32.mrb[0].mxu0
  %v605 = vadd.f32 0.0, %v604
  %v606 = vpop.f32.mrb[0].mxu0
  %v607 = vadd.f32 0.0, %v606
  %608 = vmatprep.mubr.f32.mxu0 0.0
  %609 = vmatmul.mubr.f32.gmra.mrb[0].mxu0 %v266
  %v610 = vpop.f32.mrb[0].mxu0
  %v611 = vadd.f32 0.0, %v610
  %v612 = vpop.f32.mrb[0].mxu0
  %v613 = vadd.f32 0.0, %v612
  %614 = vmatprep.mubr.f32.mxu0 0.0
  %615 = vmatmul.mubr.f32.gmra.mrb[0].mxu0 %v269
  %v616 = vpop.f32.mrb[0].mxu0
  %v617 = vadd.f32 0.0, %v616
  %v618 = vpop.f32.mrb[0].mxu0
  %v619 = vadd.f32 0.0, %v618
  %620 = vmatprep.mubr.f32.mxu0 0.0
  %621 = vmatmul.mubr.f32.gmra.mrb[0].mxu0 %v272
  %v622 = vpop.f32.mrb[0].mxu0
  %v623 = vadd.f32 0.0, %v622
  %v624 = vpop.f32.mrb[0].mxu0
  %v625 = vadd.f32 0.0, %v624
  %626 = vdwg.mxu0
  %627 = vmatprep.subr.mxu0 0.0
  %628 = vmatpush1.msra.mxu0 %v119
  %629 = vmatprep.subr.mxu0 0.0
  %630 = vmatpush1.msra.mxu0 %v122
  %631 = vmatprep.subr.mxu0 0.0
  %632 = vmatpush1.msra.mxu0 %v125
  %633 = vmatprep.subr.mxu0 0.0
  %634 = vmatpush1.msra.mxu0 %v128
  %635 = vmatprep.subr.mxu0 0.0
  %636 = vmatpush1.msra.mxu0 0.0
  %637 = vmatprep.subr.mxu0 0.0
  %638 = vmatpush1.msra.mxu0 0.0
  %639 = vmatprep.subr.mxu0 0.0
  %640 = vmatpush1.msra.mxu0 0.0
  %641 = vmatprep.subr.mxu0 0.0
  %642 = vmatpush1.msra.mxu0 0.0
  %643 = vmatprep.subr.mxu0 0.0
  %644 = vmatpush1.msra.mxu0 0.0
  %645 = vmatprep.subr.mxu0 0.0
  %646 = vmatpush1.msra.mxu0 0.0
  %647 = vmatprep.subr.mxu0 0.0
  %648 = vmatpush1.msra.mxu0 0.0
  %649 = vmatprep.subr.mxu0 0.0
  %650 = vmatpush1.msra.mxu0 0.0
  %651 = vmatprep.subr.mxu0 0.0
  %652 = vmatpush1.msra.mxu0 0.0
  %653 = vmatprep.subr.mxu0 0.0
  %654 = vmatpush1.msra.mxu0 0.0
  %655 = vmatprep.subr.mxu0 0.0
  %656 = vmatpush1.msra.mxu0 0.0
  %657 = vmatprep.subr.mxu0 0.0
  %658 = vmatpush1.msra.mxu0 0.0
  %659 = vmatprep.subr.mxu0 0.0
  %660 = vmatpush1.msra.mxu0 0.0
  %661 = vmatprep.subr.mxu0 0.0
  %662 = vmatpush1.msra.mxu0 0.0
  %663 = vmatprep.subr.mxu0 0.0
  %664 = vmatpush1.msra.mxu0 0.0
  %665 = vmatprep.subr.mxu0 0.0
  %666 = vmatpush1.msra.mxu0 0.0
  %667 = vmatprep.subr.mxu0 0.0
  %668 = vmatpush1.msra.mxu0 0.0
  %669 = vmatprep.subr.mxu0 0.0
  %670 = vmatpush1.msra.mxu0 0.0
  %671 = vmatprep.subr.mxu0 0.0
  %672 = vmatpush1.msra.mxu0 0.0
  %673 = vmatprep.subr.mxu0 0.0
  %674 = vmatpush1.msra.mxu0 0.0
  %675 = vmatprep.subr.mxu0 0.0
  %676 = vmatpush1.msra.mxu0 0.0
  %677 = vmatprep.subr.mxu0 0.0
  %678 = vmatpush1.msra.mxu0 0.0
  %679 = vmatprep.subr.mxu0 0.0
  %680 = vmatpush1.msra.mxu0 0.0
  %681 = vmatprep.subr.mxu0 0.0
  %682 = vmatpush1.msra.mxu0 0.0
  %683 = vmatprep.subr.mxu0 0.0
  %684 = vmatpush1.msra.mxu0 0.0
  %685 = vmatprep.subr.mxu0 0.0
  %686 = vmatpush1.msra.mxu0 0.0
  %687 = vmatprep.subr.mxu0 0.0
  %688 = vmatpush1.msra.mxu0 0.0
  %689 = vmatprep.subr.mxu0 0.0
  %690 = vmatpush1.msra.mxu0 0.0
  %691 = vmatprep.mubr.f32.mxu0 0.0
  %692 = vmatmul.mubr.f32.gmra.mrb[0].mxu0 %v131
  %v693 = vpop.f32.mrb[0].mxu0
  %v694 = vadd.f32 0.0, %v693
  %v695 = vpop.f32.mrb[0].mxu0
  %696 = vmatprep.mubr.f32.mxu0 0.0
  %697 = vmatmul.mubr.f32.gmra.mrb[0].mxu0 %v134
  %v698 = vpop.f32.mrb[0].mxu0
  %v699 = vadd.f32 0.0, %v698
  %v700 = vpop.f32.mrb[0].mxu0
  %701 = vmatprep.mubr.f32.mxu0 0.0
  %702 = vmatmul.mubr.f32.gmra.mrb[0].mxu0 %v137
  %v703 = vpop.f32.mrb[0].mxu0
  %v704 = vadd.f32 0.0, %v703
  %v705 = vpop.f32.mrb[0].mxu0
  %706 = vmatprep.mubr.f32.mxu0 0.0
  %707 = vmatmul.mubr.f32.gmra.mrb[0].mxu0 %v140
  %v708 = vpop.f32.mrb[0].mxu0
  %v709 = vadd.f32 0.0, %v708
  %v710 = vpop.f32.mrb[0].mxu0
  %711 = vmatprep.mubr.f32.mxu0 0.0
  %712 = vmatmul.mubr.f32.gmra.mrb[0].mxu0 %v143
  %v713 = vpop.f32.mrb[0].mxu0
  %v714 = vadd.f32 0.0, %v713
  %v715 = vpop.f32.mrb[0].mxu0
  %716 = vmatprep.mubr.f32.mxu0 0.0
  %717 = vmatmul.mubr.f32.gmra.mrb[0].mxu0 %v146
  %v718 = vpop.f32.mrb[0].mxu0
  %v719 = vadd.f32 0.0, %v718
  %v720 = vpop.f32.mrb[0].mxu0
  %721 = vmatprep.mubr.f32.mxu0 0.0
  %722 = vmatmul.mubr.f32.gmra.mrb[0].mxu0 %v149
  %v723 = vpop.f32.mrb[0].mxu0
  %v724 = vadd.f32 0.0, %v723
  %v725 = vpop.f32.mrb[0].mxu0
  %726 = vmatprep.mubr.f32.mxu0 0.0
  %727 = vmatmul.mubr.f32.gmra.mrb[0].mxu0 %v152
  %v728 = vpop.f32.mrb[0].mxu0
  %v729 = vadd.f32 0.0, %v728
  %v730 = vpop.f32.mrb[0].mxu0
  %731 = vmatprep.mubr.f32.mxu0 0.0
  %732 = vmatmul.mubr.f32.gmra.mrb[0].mxu0 %v155
  %v733 = vpop.f32.mrb[0].mxu0
  %v734 = vadd.f32 0.0, %v733
  %v735 = vpop.f32.mrb[0].mxu0
  %736 = vmatprep.mubr.f32.mxu0 0.0
  %737 = vmatmul.mubr.f32.gmra.mrb[0].mxu0 %v158
  %v738 = vpop.f32.mrb[0].mxu0
  %v739 = vadd.f32 0.0, %v738
  %v740 = vpop.f32.mrb[0].mxu0
  %741 = vmatprep.mubr.f32.mxu0 0.0
  %742 = vmatmul.mubr.f32.gmra.mrb[0].mxu0 %v161
  %v743 = vpop.f32.mrb[0].mxu0
  %v744 = vadd.f32 0.0, %v743
  %v745 = vpop.f32.mrb[0].mxu0
  %746 = vmatprep.mubr.f32.mxu0 0.0
  %747 = vmatmul.mubr.f32.gmra.mrb[0].mxu0 %v164
  %v748 = vpop.f32.mrb[0].mxu0
  %v749 = vadd.f32 0.0, %v748
  %v750 = vpop.f32.mrb[0].mxu0
  %751 = vmatprep.mubr.f32.mxu0 0.0
  %752 = vmatmul.mubr.f32.gmra.mrb[0].mxu0 %v167
  %v753 = vpop.f32.mrb[0].mxu0
  %v754 = vadd.f32 0.0, %v753
  %v755 = vpop.f32.mrb[0].mxu0
  %756 = vmatprep.mubr.f32.mxu0 0.0
  %757 = vmatmul.mubr.f32.gmra.mrb[0].mxu0 %v170
  %v758 = vpop.f32.mrb[0].mxu0
  %v759 = vadd.f32 0.0, %v758
  %v760 = vpop.f32.mrb[0].mxu0
  %761 = vmatprep.mubr.f32.mxu0 0.0
  %762 = vmatmul.mubr.f32.gmra.mrb[0].mxu0 %v173
  %v763 = vpop.f32.mrb[0].mxu0
  %v764 = vadd.f32 0.0, %v763
  %v765 = vpop.f32.mrb[0].mxu0
  %766 = vmatprep.mubr.f32.mxu0 0.0
  %767 = vmatmul.mubr.f32.gmra.mrb[0].mxu0 %v176
  %v768 = vpop.f32.mrb[0].mxu0
  %v769 = vadd.f32 0.0, %v768
  %v770 = vpop.f32.mrb[0].mxu0
  %771 = vmatprep.mubr.f32.mxu0 0.0
  %772 = vmatmul.mubr.f32.gmra.mrb[0].mxu0 %v179
  %v773 = vpop.f32.mrb[0].mxu0
  %v774 = vadd.f32 0.0, %v773
  %v775 = vpop.f32.mrb[0].mxu0
  %776 = vmatprep.mubr.f32.mxu0 0.0
  %777 = vmatmul.mubr.f32.gmra.mrb[0].mxu0 %v182
  %v778 = vpop.f32.mrb[0].mxu0
  %v779 = vadd.f32 0.0, %v778
  %v780 = vpop.f32.mrb[0].mxu0
  %781 = vmatprep.mubr.f32.mxu0 0.0
  %782 = vmatmul.mubr.f32.gmra.mrb[0].mxu0 %v185
  %v783 = vpop.f32.mrb[0].mxu0
  %v784 = vadd.f32 0.0, %v783
  %v785 = vpop.f32.mrb[0].mxu0
  %786 = vmatprep.mubr.f32.mxu0 0.0
  %787 = vmatmul.mubr.f32.gmra.mrb[0].mxu0 %v188
  %v788 = vpop.f32.mrb[0].mxu0
  %v789 = vadd.f32 0.0, %v788
  %v790 = vpop.f32.mrb[0].mxu0
  %791 = vmatprep.mubr.f32.mxu0 0.0
  %792 = vmatmul.mubr.f32.gmra.mrb[0].mxu0 %v191
  %v793 = vpop.f32.mrb[0].mxu0
  %v794 = vadd.f32 0.0, %v793
  %v795 = vpop.f32.mrb[0].mxu0
  %796 = vmatprep.mubr.f32.mxu0 0.0
  %797 = vmatmul.mubr.f32.gmra.mrb[0].mxu0 %v194
  %v798 = vpop.f32.mrb[0].mxu0
  %v799 = vadd.f32 0.0, %v798
  %v800 = vpop.f32.mrb[0].mxu0
  %801 = vmatprep.mubr.f32.mxu0 0.0
  %802 = vmatmul.mubr.f32.gmra.mrb[0].mxu0 %v197
  %v803 = vpop.f32.mrb[0].mxu0
  %v804 = vadd.f32 0.0, %v803
  %v805 = vpop.f32.mrb[0].mxu0
  %806 = vmatprep.mubr.f32.mxu0 0.0
  %807 = vmatmul.mubr.f32.gmra.mrb[0].mxu0 %v200
  %v808 = vpop.f32.mrb[0].mxu0
  %v809 = vadd.f32 0.0, %v808
  %v810 = vpop.f32.mrb[0].mxu0
  %811 = vmatprep.mubr.f32.mxu0 0.0
  %812 = vmatmul.mubr.f32.gmra.mrb[0].mxu0 %v203
  %v813 = vpop.f32.mrb[0].mxu0
  %v814 = vadd.f32 0.0, %v813
  %v815 = vpop.f32.mrb[0].mxu0
  %816 = vmatprep.mubr.f32.mxu0 0.0
  %817 = vmatmul.mubr.f32.gmra.mrb[0].mxu0 %v206
  %v818 = vpop.f32.mrb[0].mxu0
  %v819 = vadd.f32 0.0, %v818
  %v820 = vpop.f32.mrb[0].mxu0
  %821 = vmatprep.mubr.f32.mxu0 0.0
  %822 = vmatmul.mubr.f32.gmra.mrb[0].mxu0 %v209
  %v823 = vpop.f32.mrb[0].mxu0
  %v824 = vadd.f32 0.0, %v823
  %v825 = vpop.f32.mrb[0].mxu0
  %826 = vmatprep.mubr.f32.mxu0 0.0
  %827 = vmatmul.mubr.f32.gmra.mrb[0].mxu0 %v212
  %v828 = vpop.f32.mrb[0].mxu0
  %v829 = vadd.f32 0.0, %v828
  %v830 = vpop.f32.mrb[0].mxu0
  %831 = vmatprep.mubr.f32.mxu0 0.0
  %832 = vmatmul.mubr.f32.gmra.mrb[0].mxu0 %v215
  %v833 = vpop.f32.mrb[0].mxu0
  %v834 = vadd.f32 0.0, %v833
  %v835 = vpop.f32.mrb[0].mxu0
  %836 = vmatprep.mubr.f32.mxu0 0.0
  %837 = vmatmul.mubr.f32.gmra.mrb[0].mxu0 %v218
  %v838 = vpop.f32.mrb[0].mxu0
  %v839 = vadd.f32 0.0, %v838
  %v840 = vpop.f32.mrb[0].mxu0
  %841 = vmatprep.mubr.f32.mxu0 0.0
  %842 = vmatmul.mubr.f32.gmra.mrb[0].mxu0 %v221
  %v843 = vpop.f32.mrb[0].mxu0
  %v844 = vadd.f32 0.0, %v843
  %v845 = vpop.f32.mrb[0].mxu0
  %846 = vmatprep.mubr.f32.mxu0 0.0
  %847 = vmatmul.mubr.f32.gmra.mrb[0].mxu0 %v224
  %v848 = vpop.f32.mrb[0].mxu0
  %v849 = vadd.f32 0.0, %v848
  %v850 = vpop.f32.mrb[0].mxu0
  %851 = vmatprep.mubr.f32.mxu0 0.0
  %852 = vmatmul.mubr.f32.gmra.mrb[0].mxu0 %v227
  %v853 = vpop.f32.mrb[0].mxu0
  %v854 = vadd.f32 0.0, %v853
  %v855 = vpop.f32.mrb[0].mxu0
  %856 = vmatprep.mubr.f32.mxu0 0.0
  %857 = vmatmul.mubr.f32.gmra.mrb[0].mxu0 %v230
  %v858 = vpop.f32.mrb[0].mxu0
  %v859 = vadd.f32 0.0, %v858
  %v860 = vpop.f32.mrb[0].mxu0
  %861 = vmatprep.mubr.f32.mxu0 0.0
  %862 = vmatmul.mubr.f32.gmra.mrb[0].mxu0 %v233
  %v863 = vpop.f32.mrb[0].mxu0
  %v864 = vadd.f32 0.0, %v863
  %v865 = vpop.f32.mrb[0].mxu0
  %866 = vmatprep.mubr.f32.mxu0 0.0
  %867 = vmatmul.mubr.f32.gmra.mrb[0].mxu0 %v236
  %v868 = vpop.f32.mrb[0].mxu0
  %v869 = vadd.f32 0.0, %v868
  %v870 = vpop.f32.mrb[0].mxu0
  %871 = vmatprep.mubr.f32.mxu0 0.0
  %872 = vmatmul.mubr.f32.gmra.mrb[0].mxu0 %v239
  %v873 = vpop.f32.mrb[0].mxu0
  %v874 = vadd.f32 0.0, %v873
  %v875 = vpop.f32.mrb[0].mxu0
  %876 = vmatprep.mubr.f32.mxu0 0.0
  %877 = vmatmul.mubr.f32.gmra.mrb[0].mxu0 %v242
  %v878 = vpop.f32.mrb[0].mxu0
  %v879 = vadd.f32 0.0, %v878
  %v880 = vpop.f32.mrb[0].mxu0
  %881 = vmatprep.mubr.f32.mxu0 0.0
  %882 = vmatmul.mubr.f32.gmra.mrb[0].mxu0 %v245
  %v883 = vpop.f32.mrb[0].mxu0
  %v884 = vadd.f32 0.0, %v883
  %v885 = vpop.f32.mrb[0].mxu0
  %886 = vmatprep.mubr.f32.mxu0 0.0
  %887 = vmatmul.mubr.f32.gmra.mrb[0].mxu0 %v248
  %v888 = vpop.f32.mrb[0].mxu0
  %v889 = vadd.f32 0.0, %v888
  %v890 = vpop.f32.mrb[0].mxu0
  %891 = vmatprep.mubr.f32.mxu0 0.0
  %892 = vmatmul.mubr.f32.gmra.mrb[0].mxu0 %v251
  %v893 = vpop.f32.mrb[0].mxu0
  %v894 = vadd.f32 0.0, %v893
  %v895 = vpop.f32.mrb[0].mxu0
  %896 = vmatprep.mubr.f32.mxu0 0.0
  %897 = vmatmul.mubr.f32.gmra.mrb[0].mxu0 %v254
  %v898 = vpop.f32.mrb[0].mxu0
  %v899 = vadd.f32 0.0, %v898
  %v900 = vpop.f32.mrb[0].mxu0
  %901 = vmatprep.mubr.f32.mxu0 0.0
  %902 = vmatmul.mubr.f32.gmra.mrb[0].mxu0 %v257
  %v903 = vpop.f32.mrb[0].mxu0
  %v904 = vadd.f32 0.0, %v903
  %v905 = vpop.f32.mrb[0].mxu0
  %906 = vmatprep.mubr.f32.mxu0 0.0
  %907 = vmatmul.mubr.f32.gmra.mrb[0].mxu0 %v260
  %v908 = vpop.f32.mrb[0].mxu0
  %v909 = vadd.f32 0.0, %v908
  %v910 = vpop.f32.mrb[0].mxu0
  %911 = vmatprep.mubr.f32.mxu0 0.0
  %912 = vmatmul.mubr.f32.gmra.mrb[0].mxu0 %v263
  %v913 = vpop.f32.mrb[0].mxu0
  %v914 = vadd.f32 0.0, %v913
  %v915 = vpop.f32.mrb[0].mxu0
  %916 = vmatprep.mubr.f32.mxu0 0.0
  %917 = vmatmul.mubr.f32.gmra.mrb[0].mxu0 %v266
  %v918 = vpop.f32.mrb[0].mxu0
  %v919 = vadd.f32 0.0, %v918
  %v920 = vpop.f32.mrb[0].mxu0
  %921 = vmatprep.mubr.f32.mxu0 0.0
  %922 = vmatmul.mubr.f32.gmra.mrb[0].mxu0 %v269
  %v923 = vpop.f32.mrb[0].mxu0
  %v924 = vadd.f32 0.0, %v923
  %v925 = vpop.f32.mrb[0].mxu0
  %926 = vmatprep.mubr.f32.mxu0 0.0
  %927 = vmatmul.mubr.f32.gmra.mrb[0].mxu0 %v272
  %v928 = vpop.f32.mrb[0].mxu0
  %v929 = vadd.f32 0.0, %v928
  %v930 = vpop.f32.mrb[0].mxu0
  %931 = vdwg.mxu0
  %v932 = vadd.f32 %v341, 1.0
  %v933 = vadd.f32 %v343, 1.0
  %v934 = vadd.f32 %v694, 1.0
  %v935 = vadd.f32 %v347, 1.0
  %v936 = vadd.f32 %v349, 1.0
  %v937 = vadd.f32 %v699, 1.0
  %v938 = vadd.f32 %v353, 1.0
  %v939 = vadd.f32 %v355, 1.0
  %v940 = vadd.f32 %v704, 1.0
  %v941 = vadd.f32 %v359, 1.0
  %v942 = vadd.f32 %v361, 1.0
  %v943 = vadd.f32 %v709, 1.0
  %v944 = vadd.f32 %v365, 1.0
  %v945 = vadd.f32 %v367, 1.0
  %v946 = vadd.f32 %v714, 1.0
  %v947 = vadd.f32 %v371, 1.0
  %v948 = vadd.f32 %v373, 1.0
  %v949 = vadd.f32 %v719, 1.0
  %v950 = vadd.f32 %v377, 1.0
  %v951 = vadd.f32 %v379, 1.0
  %v952 = vadd.f32 %v724, 1.0
  %v953 = vadd.f32 %v383, 1.0
  %v954 = vadd.f32 %v385, 1.0
  %v955 = vadd.f32 %v729, 1.0
  %v956 = vadd.f32 %v389, 1.0
  %v957 = vadd.f32 %v391, 1.0
  %v958 = vadd.f32 %v734, 1.0
  %v959 = vadd.f32 %v395, 1.0
  %v960 = vadd.f32 %v397, 1.0
  %v961 = vadd.f32 %v739, 1.0
  %v962 = vadd.f32 %v401, 1.0
  %v963 = vadd.f32 %v403, 1.0
  %v964 = vadd.f32 %v744, 1.0
  %v965 = vadd.f32 %v407, 1.0
  %v966 = vadd.f32 %v409, 1.0
  %v967 = vadd.f32 %v749, 1.0
  %v968 = vadd.f32 %v413, 1.0
  %v969 = vadd.f32 %v415, 1.0
  %v970 = vadd.f32 %v754, 1.0
  %v971 = vadd.f32 %v419, 1.0
  %v972 = vadd.f32 %v421, 1.0
  %v973 = vadd.f32 %v759, 1.0
  %v974 = vadd.f32 %v425, 1.0
  %v975 = vadd.f32 %v427, 1.0
  %v976 = vadd.f32 %v764, 1.0
  %v977 = vadd.f32 %v431, 1.0
  %v978 = vadd.f32 %v433, 1.0
  %v979 = vadd.f32 %v769, 1.0
  %v980 = vadd.f32 %v437, 1.0
  %v981 = vadd.f32 %v439, 1.0
  %v982 = vadd.f32 %v774, 1.0
  %v983 = vadd.f32 %v443, 1.0
  %v984 = vadd.f32 %v445, 1.0
  %v985 = vadd.f32 %v779, 1.0
  %v986 = vadd.f32 %v449, 1.0
  %v987 = vadd.f32 %v451, 1.0
  %v988 = vadd.f32 %v784, 1.0
  %v989 = vadd.f32 %v455, 1.0
  %v990 = vadd.f32 %v457, 1.0
  %v991 = vadd.f32 %v789, 1.0
  %v992 = vadd.f32 %v461, 1.0
  %v993 = vadd.f32 %v463, 1.0
  %v994 = vadd.f32 %v794, 1.0
  %v995 = vadd.f32 %v467, 1.0
  %v996 = vadd.f32 %v469, 1.0
  %v997 = vadd.f32 %v799, 1.0
  %v998 = vadd.f32 %v473, 1.0
  %v999 = vadd.f32 %v475, 1.0
  %v1000 = vadd.f32 %v804, 1.0
  %v1001 = vadd.f32 %v479, 1.0
  %v1002 = vadd.f32 %v481, 1.0
  %v1003 = vadd.f32 %v809, 1.0
  %v1004 = vadd.f32 %v485, 1.0
  %v1005 = vadd.f32 %v487, 1.0
  %v1006 = vadd.f32 %v814, 1.0
  %v1007 = vadd.f32 %v491, 1.0
  %v1008 = vadd.f32 %v493, 1.0
  %v1009 = vadd.f32 %v819, 1.0
  %v1010 = vadd.f32 %v497, 1.0
  %v1011 = vadd.f32 %v499, 1.0
  %v1012 = vadd.f32 %v824, 1.0
  %v1013 = vadd.f32 %v503, 1.0
  %v1014 = vadd.f32 %v505, 1.0
  %v1015 = vadd.f32 %v829, 1.0
  %v1016 = vadd.f32 %v509, 1.0
  %v1017 = vadd.f32 %v511, 1.0
  %v1018 = vadd.f32 %v834, 1.0
  %v1019 = vadd.f32 %v515, 1.0
  %v1020 = vadd.f32 %v517, 1.0
  %v1021 = vadd.f32 %v839, 1.0
  %v1022 = vadd.f32 %v521, 1.0
  %v1023 = vadd.f32 %v523, 1.0
  %v1024 = vadd.f32 %v844, 1.0
  %v1025 = vadd.f32 %v527, 1.0
  %v1026 = vadd.f32 %v529, 1.0
  %v1027 = vadd.f32 %v849, 1.0
  %v1028 = vadd.f32 %v533, 1.0
  %v1029 = vadd.f32 %v535, 1.0
  %v1030 = vadd.f32 %v854, 1.0
  %v1031 = vadd.f32 %v539, 1.0
  %v1032 = vadd.f32 %v541, 1.0
  %v1033 = vadd.f32 %v859, 1.0
  %v1034 = vadd.f32 %v545, 1.0
  %v1035 = vadd.f32 %v547, 1.0
  %v1036 = vadd.f32 %v864, 1.0
  %v1037 = vadd.f32 %v551, 1.0
  %v1038 = vadd.f32 %v553, 1.0
  %v1039 = vadd.f32 %v869, 1.0
  %v1040 = vadd.f32 %v557, 1.0
  %v1041 = vadd.f32 %v559, 1.0
  %v1042 = vadd.f32 %v874, 1.0
  %v1043 = vadd.f32 %v563, 1.0
  %v1044 = vadd.f32 %v565, 1.0
  %v1045 = vadd.f32 %v879, 1.0
  %v1046 = vadd.f32 %v569, 1.0
  %v1047 = vadd.f32 %v571, 1.0
  %v1048 = vadd.f32 %v884, 1.0
  %v1049 = vadd.f32 %v575, 1.0
  %v1050 = vadd.f32 %v577, 1.0
  %v1051 = vadd.f32 %v889, 1.0
  %v1052 = vadd.f32 %v581, 1.0
  %v1053 = vadd.f32 %v583, 1.0
  %v1054 = vadd.f32 %v894, 1.0
  %v1055 = vadd.f32 %v587, 1.0
  %v1056 = vadd.f32 %v589, 1.0
  %v1057 = vadd.f32 %v899, 1.0
  %v1058 = vadd.f32 %v593, 1.0
  %v1059 = vadd.f32 %v595, 1.0
  %v1060 = vadd.f32 %v904, 1.0
  %v1061 = vadd.f32 %v599, 1.0
  %v1062 = vadd.f32 %v601, 1.0
  %v1063 = vadd.f32 %v909, 1.0
  %v1064 = vadd.f32 %v605, 1.0
  %v1065 = vadd.f32 %v607, 1.0
  %v1066 = vadd.f32 %v914, 1.0
  %v1067 = vadd.f32 %v611, 1.0
  %v1068 = vadd.f32 %v613, 1.0
  %v1069 = vadd.f32 %v919, 1.0
  %v1070 = vadd.f32 %v617, 1.0
  %v1071 = vadd.f32 %v619, 1.0
  %v1072 = vadd.f32 %v924, 1.0
  %v1073 = vadd.f32 %v623, 1.0
  %v1074 = vadd.f32 %v625, 1.0
  %v1075 = vadd.f32 %v929, 1.0
  %v1076 = vstv %s19
  %v1077 = vmul.f32 %v1076, %v932
  %v1078 = vmul.f32 %v1076, %v933
  %v1079 = vmul.f32 %v1076, %v934
  %v1080 = vmul.f32 %v1076, %v935
  %v1081 = vmul.f32 %v1076, %v936
  %v1082 = vmul.f32 %v1076, %v937
  %v1083 = vmul.f32 %v1076, %v938
  %v1084 = vmul.f32 %v1076, %v939
  %v1085 = vmul.f32 %v1076, %v940
  %v1086 = vmul.f32 %v1076, %v941
  %v1087 = vmul.f32 %v1076, %v942
  %v1088 = vmul.f32 %v1076, %v943
  %v1089 = vmul.f32 %v1076, %v944
  %v1090 = vmul.f32 %v1076, %v945
  %v1091 = vmul.f32 %v1076, %v946
  %v1092 = vmul.f32 %v1076, %v947
  %v1093 = vmul.f32 %v1076, %v948
  %v1094 = vmul.f32 %v1076, %v949
  %v1095 = vmul.f32 %v1076, %v950
  %v1096 = vmul.f32 %v1076, %v951
  %v1097 = vmul.f32 %v1076, %v952
  %v1098 = vmul.f32 %v1076, %v953
  %v1099 = vmul.f32 %v1076, %v954
  %v1100 = vmul.f32 %v1076, %v955
  %v1101 = vmul.f32 %v1076, %v956
  %v1102 = vmul.f32 %v1076, %v957
  %v1103 = vmul.f32 %v1076, %v958
  %v1104 = vmul.f32 %v1076, %v959
  %v1105 = vmul.f32 %v1076, %v960
  %v1106 = vmul.f32 %v1076, %v961
  %v1107 = vmul.f32 %v1076, %v962
  %v1108 = vmul.f32 %v1076, %v963
  %v1109 = vmul.f32 %v1076, %v964
  %v1110 = vmul.f32 %v1076, %v965
  %v1111 = vmul.f32 %v1076, %v966
  %v1112 = vmul.f32 %v1076, %v967
  %v1113 = vmul.f32 %v1076, %v968
  %v1114 = vmul.f32 %v1076, %v969
  %v1115 = vmul.f32 %v1076, %v970
  %v1116 = vmul.f32 %v1076, %v971
  %v1117 = vmul.f32 %v1076, %v972
  %v1118 = vmul.f32 %v1076, %v973
  %v1119 = vmul.f32 %v1076, %v974
  %v1120 = vmul.f32 %v1076, %v975
  %v1121 = vmul.f32 %v1076, %v976
  %v1122 = vmul.f32 %v1076, %v977
  %v1123 = vmul.f32 %v1076, %v978
  %v1124 = vmul.f32 %v1076, %v979
  %v1125 = vmul.f32 %v1076, %v980
  %v1126 = vmul.f32 %v1076, %v981
  %v1127 = vmul.f32 %v1076, %v982
  %v1128 = vmul.f32 %v1076, %v983
  %v1129 = vmul.f32 %v1076, %v984
  %v1130 = vmul.f32 %v1076, %v985
  %v1131 = vmul.f32 %v1076, %v986
  %v1132 = vmul.f32 %v1076, %v987
  %v1133 = vmul.f32 %v1076, %v988
  %v1134 = vmul.f32 %v1076, %v989
  %v1135 = vmul.f32 %v1076, %v990
  %v1136 = vmul.f32 %v1076, %v991
  %v1137 = vmul.f32 %v1076, %v992
  %v1138 = vmul.f32 %v1076, %v993
  %v1139 = vmul.f32 %v1076, %v994
  %v1140 = vmul.f32 %v1076, %v995
  %v1141 = vmul.f32 %v1076, %v996
  %v1142 = vmul.f32 %v1076, %v997
  %v1143 = vmul.f32 %v1076, %v998
  %v1144 = vmul.f32 %v1076, %v999
  %v1145 = vmul.f32 %v1076, %v1000
  %v1146 = vmul.f32 %v1076, %v1001
  %v1147 = vmul.f32 %v1076, %v1002
  %v1148 = vmul.f32 %v1076, %v1003
  %v1149 = vmul.f32 %v1076, %v1004
  %v1150 = vmul.f32 %v1076, %v1005
  %v1151 = vmul.f32 %v1076, %v1006
  %v1152 = vmul.f32 %v1076, %v1007
  %v1153 = vmul.f32 %v1076, %v1008
  %v1154 = vmul.f32 %v1076, %v1009
  %v1155 = vmul.f32 %v1076, %v1010
  %v1156 = vmul.f32 %v1076, %v1011
  %v1157 = vmul.f32 %v1076, %v1012
  %v1158 = vmul.f32 %v1076, %v1013
  %v1159 = vmul.f32 %v1076, %v1014
  %v1160 = vmul.f32 %v1076, %v1015
  %v1161 = vmul.f32 %v1076, %v1016
  %v1162 = vmul.f32 %v1076, %v1017
  %v1163 = vmul.f32 %v1076, %v1018
  %v1164 = vmul.f32 %v1076, %v1019
  %v1165 = vmul.f32 %v1076, %v1020
  %v1166 = vmul.f32 %v1076, %v1021
  %v1167 = vmul.f32 %v1076, %v1022
  %v1168 = vmul.f32 %v1076, %v1023
  %v1169 = vmul.f32 %v1076, %v1024
  %v1170 = vmul.f32 %v1076, %v1025
  %v1171 = vmul.f32 %v1076, %v1026
  %v1172 = vmul.f32 %v1076, %v1027
  %v1173 = vmul.f32 %v1076, %v1028
  %v1174 = vmul.f32 %v1076, %v1029
  %v1175 = vmul.f32 %v1076, %v1030
  %v1176 = vmul.f32 %v1076, %v1031
  %v1177 = vmul.f32 %v1076, %v1032
  %v1178 = vmul.f32 %v1076, %v1033
  %v1179 = vmul.f32 %v1076, %v1034
  %v1180 = vmul.f32 %v1076, %v1035
  %v1181 = vmul.f32 %v1076, %v1036
  %v1182 = vmul.f32 %v1076, %v1037
  %v1183 = vmul.f32 %v1076, %v1038
  %v1184 = vmul.f32 %v1076, %v1039
  %v1185 = vmul.f32 %v1076, %v1040
  %v1186 = vmul.f32 %v1076, %v1041
  %v1187 = vmul.f32 %v1076, %v1042
  %v1188 = vmul.f32 %v1076, %v1043
  %v1189 = vmul.f32 %v1076, %v1044
  %v1190 = vmul.f32 %v1076, %v1045
  %v1191 = vmul.f32 %v1076, %v1046
  %v1192 = vmul.f32 %v1076, %v1047
  %v1193 = vmul.f32 %v1076, %v1048
  %v1194 = vmul.f32 %v1076, %v1049
  %v1195 = vmul.f32 %v1076, %v1050
  %v1196 = vmul.f32 %v1076, %v1051
  %v1197 = vmul.f32 %v1076, %v1052
  %v1198 = vmul.f32 %v1076, %v1053
  %v1199 = vmul.f32 %v1076, %v1054
  %v1200 = vmul.f32 %v1076, %v1055
  %v1201 = vmul.f32 %v1076, %v1056
  %v1202 = vmul.f32 %v1076, %v1057
  %v1203 = vmul.f32 %v1076, %v1058
  %v1204 = vmul.f32 %v1076, %v1059
  %v1205 = vmul.f32 %v1076, %v1060
  %v1206 = vmul.f32 %v1076, %v1061
  %v1207 = vmul.f32 %v1076, %v1062
  %v1208 = vmul.f32 %v1076, %v1063
  %v1209 = vmul.f32 %v1076, %v1064
  %v1210 = vmul.f32 %v1076, %v1065
  %v1211 = vmul.f32 %v1076, %v1066
  %v1212 = vmul.f32 %v1076, %v1067
  %v1213 = vmul.f32 %v1076, %v1068
  %v1214 = vmul.f32 %v1076, %v1069
  %v1215 = vmul.f32 %v1076, %v1070
  %v1216 = vmul.f32 %v1076, %v1071
  %v1217 = vmul.f32 %v1076, %v1072
  %v1218 = vmul.f32 %v1076, %v1073
  %v1219 = vmul.f32 %v1076, %v1074
  %v1220 = vmul.f32 %v1076, %v1075
  %v1221 = vsub.f32 0.0, %v341
  %v1222 = vsub.f32 0.0, %v343
  %v1223 = vsub.f32 0.0, %v694
  %v1224 = vsub.f32 0.0, %v347
  %v1225 = vsub.f32 0.0, %v349
  %v1226 = vsub.f32 0.0, %v699
  %v1227 = vsub.f32 0.0, %v353
  %v1228 = vsub.f32 0.0, %v355
  %v1229 = vsub.f32 0.0, %v704
  %v1230 = vsub.f32 0.0, %v359
  %v1231 = vsub.f32 0.0, %v361
  %v1232 = vsub.f32 0.0, %v709
  %v1233 = vsub.f32 0.0, %v365
  %v1234 = vsub.f32 0.0, %v367
  %v1235 = vsub.f32 0.0, %v714
  %v1236 = vsub.f32 0.0, %v371
  %v1237 = vsub.f32 0.0, %v373
  %v1238 = vsub.f32 0.0, %v719
  %v1239 = vsub.f32 0.0, %v377
  %v1240 = vsub.f32 0.0, %v379
  %v1241 = vsub.f32 0.0, %v724
  %v1242 = vsub.f32 0.0, %v383
  %v1243 = vsub.f32 0.0, %v385
  %v1244 = vsub.f32 0.0, %v729
  %v1245 = vsub.f32 0.0, %v389
  %v1246 = vsub.f32 0.0, %v391
  %v1247 = vsub.f32 0.0, %v734
  %v1248 = vsub.f32 0.0, %v395
  %v1249 = vsub.f32 0.0, %v397
  %v1250 = vsub.f32 0.0, %v739
  %v1251 = vsub.f32 0.0, %v401
  %v1252 = vsub.f32 0.0, %v403
  %v1253 = vsub.f32 0.0, %v744
  %v1254 = vsub.f32 0.0, %v407
  %v1255 = vsub.f32 0.0, %v409
  %v1256 = vsub.f32 0.0, %v749
  %v1257 = vsub.f32 0.0, %v413
  %v1258 = vsub.f32 0.0, %v415
  %v1259 = vsub.f32 0.0, %v754
  %v1260 = vsub.f32 0.0, %v419
  %v1261 = vsub.f32 0.0, %v421
  %v1262 = vsub.f32 0.0, %v759
  %v1263 = vsub.f32 0.0, %v425
  %v1264 = vsub.f32 0.0, %v427
  %v1265 = vsub.f32 0.0, %v764
  %v1266 = vsub.f32 0.0, %v431
  %v1267 = vsub.f32 0.0, %v433
  %v1268 = vsub.f32 0.0, %v769
  %v1269 = vsub.f32 0.0, %v437
  %v1270 = vsub.f32 0.0, %v439
  %v1271 = vsub.f32 0.0, %v774
  %v1272 = vsub.f32 0.0, %v443
  %v1273 = vsub.f32 0.0, %v445
  %v1274 = vsub.f32 0.0, %v779
  %v1275 = vsub.f32 0.0, %v449
  %v1276 = vsub.f32 0.0, %v451
  %v1277 = vsub.f32 0.0, %v784
  %v1278 = vsub.f32 0.0, %v455
  %v1279 = vsub.f32 0.0, %v457
  %v1280 = vsub.f32 0.0, %v789
  %v1281 = vsub.f32 0.0, %v461
  %v1282 = vsub.f32 0.0, %v463
  %v1283 = vsub.f32 0.0, %v794
  %v1284 = vsub.f32 0.0, %v467
  %v1285 = vsub.f32 0.0, %v469
  %v1286 = vsub.f32 0.0, %v799
  %v1287 = vsub.f32 0.0, %v473
  %v1288 = vsub.f32 0.0, %v475
  %v1289 = vsub.f32 0.0, %v804
  %v1290 = vsub.f32 0.0, %v479
  %v1291 = vsub.f32 0.0, %v481
  %v1292 = vsub.f32 0.0, %v809
  %v1293 = vsub.f32 0.0, %v485
  %v1294 = vsub.f32 0.0, %v487
  %v1295 = vsub.f32 0.0, %v814
  %v1296 = vsub.f32 0.0, %v491
  %v1297 = vsub.f32 0.0, %v493
  %v1298 = vsub.f32 0.0, %v819
  %v1299 = vsub.f32 0.0, %v497
  %v1300 = vsub.f32 0.0, %v499
  %v1301 = vsub.f32 0.0, %v824
  %v1302 = vsub.f32 0.0, %v503
  %v1303 = vsub.f32 0.0, %v505
  %v1304 = vsub.f32 0.0, %v829
  %v1305 = vsub.f32 0.0, %v509
  %v1306 = vsub.f32 0.0, %v511
  %v1307 = vsub.f32 0.0, %v834
  %v1308 = vsub.f32 0.0, %v515
  %v1309 = vsub.f32 0.0, %v517
  %v1310 = vsub.f32 0.0, %v839
  %v1311 = vsub.f32 0.0, %v521
  %v1312 = vsub.f32 0.0, %v523
  %v1313 = vsub.f32 0.0, %v844
  %v1314 = vsub.f32 0.0, %v527
  %v1315 = vsub.f32 0.0, %v529
  %v1316 = vsub.f32 0.0, %v849
  %v1317 = vsub.f32 0.0, %v533
  %v1318 = vsub.f32 0.0, %v535
  %v1319 = vsub.f32 0.0, %v854
  %v1320 = vsub.f32 0.0, %v539
  %v1321 = vsub.f32 0.0, %v541
  %v1322 = vsub.f32 0.0, %v859
  %v1323 = vsub.f32 0.0, %v545
  %v1324 = vsub.f32 0.0, %v547
  %v1325 = vsub.f32 0.0, %v864
  %v1326 = vsub.f32 0.0, %v551
  %v1327 = vsub.f32 0.0, %v553
  %v1328 = vsub.f32 0.0, %v869
  %v1329 = vsub.f32 0.0, %v557
  %v1330 = vsub.f32 0.0, %v559
  %v1331 = vsub.f32 0.0, %v874
  %v1332 = vsub.f32 0.0, %v563
  %v1333 = vsub.f32 0.0, %v565
  %v1334 = vsub.f32 0.0, %v879
  %v1335 = vsub.f32 0.0, %v569
  %v1336 = vsub.f32 0.0, %v571
  %v1337 = vsub.f32 0.0, %v884
  %v1338 = vsub.f32 0.0, %v575
  %v1339 = vsub.f32 0.0, %v577
  %v1340 = vsub.f32 0.0, %v889
  %v1341 = vsub.f32 0.0, %v581
  %v1342 = vsub.f32 0.0, %v583
  %v1343 = vsub.f32 0.0, %v894
  %v1344 = vsub.f32 0.0, %v587
  %v1345 = vsub.f32 0.0, %v589
  %v1346 = vsub.f32 0.0, %v899
  %v1347 = vsub.f32 0.0, %v593
  %v1348 = vsub.f32 0.0, %v595
  %v1349 = vsub.f32 0.0, %v904
  %v1350 = vsub.f32 0.0, %v599
  %v1351 = vsub.f32 0.0, %v601
  %v1352 = vsub.f32 0.0, %v909
  %v1353 = vsub.f32 0.0, %v605
  %v1354 = vsub.f32 0.0, %v607
  %v1355 = vsub.f32 0.0, %v914
  %v1356 = vsub.f32 0.0, %v611
  %v1357 = vsub.f32 0.0, %v613
  %v1358 = vsub.f32 0.0, %v919
  %v1359 = vsub.f32 0.0, %v617
  %v1360 = vsub.f32 0.0, %v619
  %v1361 = vsub.f32 0.0, %v924
  %v1362 = vsub.f32 0.0, %v623
  %v1363 = vsub.f32 0.0, %v625
  %v1364 = vsub.f32 0.0, %v929
  %v1365 = vmul.f32 %v1221, 1.442695
  %v1366 = vpow.pop %v1365
  %v1367 = vmul.f32 %v1222, 1.442695
  %v1368 = vpow.pop %v1367
  %v1369 = vmul.f32 %v1223, 1.442695
  %v1370 = vpow.pop %v1369
  %v1371 = vmul.f32 %v1224, 1.442695
  %v1372 = vpow.pop %v1371
  %v1373 = vmul.f32 %v1225, 1.442695
  %v1374 = vpow.pop %v1373
  %v1375 = vmul.f32 %v1226, 1.442695
  %v1376 = vpow.pop %v1375
  %v1377 = vmul.f32 %v1227, 1.442695
  %v1378 = vpow.pop %v1377
  %v1379 = vmul.f32 %v1228, 1.442695
  %v1380 = vpow.pop %v1379
  %v1381 = vmul.f32 %v1229, 1.442695
  %v1382 = vpow.pop %v1381
  %v1383 = vmul.f32 %v1230, 1.442695
  %v1384 = vpow.pop %v1383
  %v1385 = vmul.f32 %v1231, 1.442695
  %v1386 = vpow.pop %v1385
  %v1387 = vmul.f32 %v1232, 1.442695
  %v1388 = vpow.pop %v1387
  %v1389 = vmul.f32 %v1233, 1.442695
  %v1390 = vpow.pop %v1389
  %v1391 = vmul.f32 %v1234, 1.442695
  %v1392 = vpow.pop %v1391
  %v1393 = vmul.f32 %v1235, 1.442695
  %v1394 = vpow.pop %v1393
  %v1395 = vmul.f32 %v1236, 1.442695
  %v1396 = vpow.pop %v1395
  %v1397 = vmul.f32 %v1237, 1.442695
  %v1398 = vpow.pop %v1397
  %v1399 = vmul.f32 %v1238, 1.442695
  %v1400 = vpow.pop %v1399
  %v1401 = vmul.f32 %v1239, 1.442695
  %v1402 = vpow.pop %v1401
  %v1403 = vmul.f32 %v1240, 1.442695
  %v1404 = vpow.pop %v1403
  %v1405 = vmul.f32 %v1241, 1.442695
  %v1406 = vpow.pop %v1405
  %v1407 = vmul.f32 %v1242, 1.442695
  %v1408 = vpow.pop %v1407
  %v1409 = vmul.f32 %v1243, 1.442695
  %v1410 = vpow.pop %v1409
  %v1411 = vmul.f32 %v1244, 1.442695
  %v1412 = vpow.pop %v1411
  %v1413 = vmul.f32 %v1245, 1.442695
  %v1414 = vpow.pop %v1413
  %v1415 = vmul.f32 %v1246, 1.442695
  %v1416 = vpow.pop %v1415
  %v1417 = vmul.f32 %v1247, 1.442695
  %v1418 = vpow.pop %v1417
  %v1419 = vmul.f32 %v1248, 1.442695
  %v1420 = vpow.pop %v1419
  %v1421 = vmul.f32 %v1249, 1.442695
  %v1422 = vpow.pop %v1421
  %v1423 = vmul.f32 %v1250, 1.442695
  %v1424 = vpow.pop %v1423
  %v1425 = vmul.f32 %v1251, 1.442695
  %v1426 = vpow.pop %v1425
  %v1427 = vmul.f32 %v1252, 1.442695
  %v1428 = vpow.pop %v1427
  %v1429 = vmul.f32 %v1253, 1.442695
  %v1430 = vpow.pop %v1429
  %v1431 = vmul.f32 %v1254, 1.442695
  %v1432 = vpow.pop %v1431
  %v1433 = vmul.f32 %v1255, 1.442695
  %v1434 = vpow.pop %v1433
  %v1435 = vmul.f32 %v1256, 1.442695
  %v1436 = vpow.pop %v1435
  %v1437 = vmul.f32 %v1257, 1.442695
  %v1438 = vpow.pop %v1437
  %v1439 = vmul.f32 %v1258, 1.442695
  %v1440 = vpow.pop %v1439
  %v1441 = vmul.f32 %v1259, 1.442695
  %v1442 = vpow.pop %v1441
  %v1443 = vmul.f32 %v1260, 1.442695
  %v1444 = vpow.pop %v1443
  %v1445 = vmul.f32 %v1261, 1.442695
  %v1446 = vpow.pop %v1445
  %v1447 = vmul.f32 %v1262, 1.442695
  %v1448 = vpow.pop %v1447
  %v1449 = vmul.f32 %v1263, 1.442695
  %v1450 = vpow.pop %v1449
  %v1451 = vmul.f32 %v1264, 1.442695
  %v1452 = vpow.pop %v1451
  %v1453 = vmul.f32 %v1265, 1.442695
  %v1454 = vpow.pop %v1453
  %v1455 = vmul.f32 %v1266, 1.442695
  %v1456 = vpow.pop %v1455
  %v1457 = vmul.f32 %v1267, 1.442695
  %v1458 = vpow.pop %v1457
  %v1459 = vmul.f32 %v1268, 1.442695
  %v1460 = vpow.pop %v1459
  %v1461 = vmul.f32 %v1269, 1.442695
  %v1462 = vpow.pop %v1461
  %v1463 = vmul.f32 %v1270, 1.442695
  %v1464 = vpow.pop %v1463
  %v1465 = vmul.f32 %v1271, 1.442695
  %v1466 = vpow.pop %v1465
  %v1467 = vmul.f32 %v1272, 1.442695
  %v1468 = vpow.pop %v1467
  %v1469 = vmul.f32 %v1273, 1.442695
  %v1470 = vpow.pop %v1469
  %v1471 = vmul.f32 %v1274, 1.442695
  %v1472 = vpow.pop %v1471
  %v1473 = vmul.f32 %v1275, 1.442695
  %v1474 = vpow.pop %v1473
  %v1475 = vmul.f32 %v1276, 1.442695
  %v1476 = vpow.pop %v1475
  %v1477 = vmul.f32 %v1277, 1.442695
  %v1478 = vpow.pop %v1477
  %v1479 = vmul.f32 %v1278, 1.442695
  %v1480 = vpow.pop %v1479
  %v1481 = vmul.f32 %v1279, 1.442695
  %v1482 = vpow.pop %v1481
  %v1483 = vmul.f32 %v1280, 1.442695
  %v1484 = vpow.pop %v1483
  %v1485 = vmul.f32 %v1281, 1.442695
  %v1486 = vpow.pop %v1485
  %v1487 = vmul.f32 %v1282, 1.442695
  %v1488 = vpow.pop %v1487
  %v1489 = vmul.f32 %v1283, 1.442695
  %v1490 = vpow.pop %v1489
  %v1491 = vmul.f32 %v1284, 1.442695
  %v1492 = vpow.pop %v1491
  %v1493 = vmul.f32 %v1285, 1.442695
  %v1494 = vpow.pop %v1493
  %v1495 = vmul.f32 %v1286, 1.442695
  %v1496 = vpow.pop %v1495
  %v1497 = vmul.f32 %v1287, 1.442695
  %v1498 = vpow.pop %v1497
  %v1499 = vmul.f32 %v1288, 1.442695
  %v1500 = vpow.pop %v1499
  %v1501 = vmul.f32 %v1289, 1.442695
  %v1502 = vpow.pop %v1501
  %v1503 = vmul.f32 %v1290, 1.442695
  %v1504 = vpow.pop %v1503
  %v1505 = vmul.f32 %v1291, 1.442695
  %v1506 = vpow.pop %v1505
  %v1507 = vmul.f32 %v1292, 1.442695
  %v1508 = vpow.pop %v1507
  %v1509 = vmul.f32 %v1293, 1.442695
  %v1510 = vpow.pop %v1509
  %v1511 = vmul.f32 %v1294, 1.442695
  %v1512 = vpow.pop %v1511
  %v1513 = vmul.f32 %v1295, 1.442695
  %v1514 = vpow.pop %v1513
  %v1515 = vmul.f32 %v1296, 1.442695
  %v1516 = vpow.pop %v1515
  %v1517 = vmul.f32 %v1297, 1.442695
  %v1518 = vpow.pop %v1517
  %v1519 = vmul.f32 %v1298, 1.442695
  %v1520 = vpow.pop %v1519
  %v1521 = vmul.f32 %v1299, 1.442695
  %v1522 = vpow.pop %v1521
  %v1523 = vmul.f32 %v1300, 1.442695
  %v1524 = vpow.pop %v1523
  %v1525 = vmul.f32 %v1301, 1.442695
  %v1526 = vpow.pop %v1525
  %v1527 = vmul.f32 %v1302, 1.442695
  %v1528 = vpow.pop %v1527
  %v1529 = vmul.f32 %v1303, 1.442695
  %v1530 = vpow.pop %v1529
  %v1531 = vmul.f32 %v1304, 1.442695
  %v1532 = vpow.pop %v1531
  %v1533 = vmul.f32 %v1305, 1.442695
  %v1534 = vpow.pop %v1533
  %v1535 = vmul.f32 %v1306, 1.442695
  %v1536 = vpow.pop %v1535
  %v1537 = vmul.f32 %v1307, 1.442695
  %v1538 = vpow.pop %v1537
  %v1539 = vmul.f32 %v1308, 1.442695
  %v1540 = vpow.pop %v1539
  %v1541 = vmul.f32 %v1309, 1.442695
  %v1542 = vpow.pop %v1541
  %v1543 = vmul.f32 %v1310, 1.442695
  %v1544 = vpow.pop %v1543
  %v1545 = vmul.f32 %v1311, 1.442695
  %v1546 = vpow.pop %v1545
  %v1547 = vmul.f32 %v1312, 1.442695
  %v1548 = vpow.pop %v1547
  %v1549 = vmul.f32 %v1313, 1.442695
  %v1550 = vpow.pop %v1549
  %v1551 = vmul.f32 %v1314, 1.442695
  %v1552 = vpow.pop %v1551
  %v1553 = vmul.f32 %v1315, 1.442695
  %v1554 = vpow.pop %v1553
  %v1555 = vmul.f32 %v1316, 1.442695
  %v1556 = vpow.pop %v1555
  %v1557 = vmul.f32 %v1317, 1.442695
  %v1558 = vpow.pop %v1557
  %v1559 = vmul.f32 %v1318, 1.442695
  %v1560 = vpow.pop %v1559
  %v1561 = vmul.f32 %v1319, 1.442695
  %v1562 = vpow.pop %v1561
  %v1563 = vmul.f32 %v1320, 1.442695
  %v1564 = vpow.pop %v1563
  %v1565 = vmul.f32 %v1321, 1.442695
  %v1566 = vpow.pop %v1565
  %v1567 = vmul.f32 %v1322, 1.442695
  %v1568 = vpow.pop %v1567
  %v1569 = vmul.f32 %v1323, 1.442695
  %v1570 = vpow.pop %v1569
  %v1571 = vmul.f32 %v1324, 1.442695
  %v1572 = vpow.pop %v1571
  %v1573 = vmul.f32 %v1325, 1.442695
  %v1574 = vpow.pop %v1573
  %v1575 = vmul.f32 %v1326, 1.442695
  %v1576 = vpow.pop %v1575
  %v1577 = vmul.f32 %v1327, 1.442695
  %v1578 = vpow.pop %v1577
  %v1579 = vmul.f32 %v1328, 1.442695
  %v1580 = vpow.pop %v1579
  %v1581 = vmul.f32 %v1329, 1.442695
  %v1582 = vpow.pop %v1581
  %v1583 = vmul.f32 %v1330, 1.442695
  %v1584 = vpow.pop %v1583
  %v1585 = vmul.f32 %v1331, 1.442695
  %v1586 = vpow.pop %v1585
  %v1587 = vmul.f32 %v1332, 1.442695
  %v1588 = vpow.pop %v1587
  %v1589 = vmul.f32 %v1333, 1.442695
  %v1590 = vpow.pop %v1589
  %v1591 = vmul.f32 %v1334, 1.442695
  %v1592 = vpow.pop %v1591
  %v1593 = vmul.f32 %v1335, 1.442695
  %v1594 = vpow.pop %v1593
  %v1595 = vmul.f32 %v1336, 1.442695
  %v1596 = vpow.pop %v1595
  %v1597 = vmul.f32 %v1337, 1.442695
  %v1598 = vpow.pop %v1597
  %v1599 = vmul.f32 %v1338, 1.442695
  %v1600 = vpow.pop %v1599
  %v1601 = vmul.f32 %v1339, 1.442695
  %v1602 = vpow.pop %v1601
  %v1603 = vmul.f32 %v1340, 1.442695
  %v1604 = vpow.pop %v1603
  %v1605 = vmul.f32 %v1341, 1.442695
  %v1606 = vpow.pop %v1605
  %v1607 = vmul.f32 %v1342, 1.442695
  %v1608 = vpow.pop %v1607
  %v1609 = vmul.f32 %v1343, 1.442695
  %v1610 = vpow.pop %v1609
  %v1611 = vmul.f32 %v1344, 1.442695
  %v1612 = vpow.pop %v1611
  %v1613 = vmul.f32 %v1345, 1.442695
  %v1614 = vpow.pop %v1613
  %v1615 = vmul.f32 %v1346, 1.442695
  %v1616 = vpow.pop %v1615
  %v1617 = vmul.f32 %v1347, 1.442695
  %v1618 = vpow.pop %v1617
  %v1619 = vmul.f32 %v1348, 1.442695
  %v1620 = vpow.pop %v1619
  %v1621 = vmul.f32 %v1349, 1.442695
  %v1622 = vpow.pop %v1621
  %v1623 = vmul.f32 %v1350, 1.442695
  %v1624 = vpow.pop %v1623
  %v1625 = vmul.f32 %v1351, 1.442695
  %v1626 = vpow.pop %v1625
  %v1627 = vmul.f32 %v1352, 1.442695
  %v1628 = vpow.pop %v1627
  %v1629 = vmul.f32 %v1353, 1.442695
  %v1630 = vpow.pop %v1629
  %v1631 = vmul.f32 %v1354, 1.442695
  %v1632 = vpow.pop %v1631
  %v1633 = vmul.f32 %v1355, 1.442695
  %v1634 = vpow.pop %v1633
  %v1635 = vmul.f32 %v1356, 1.442695
  %v1636 = vpow.pop %v1635
  %v1637 = vmul.f32 %v1357, 1.442695
  %v1638 = vpow.pop %v1637
  %v1639 = vmul.f32 %v1358, 1.442695
  %v1640 = vpow.pop %v1639
  %v1641 = vmul.f32 %v1359, 1.442695
  %v1642 = vpow.pop %v1641
  %v1643 = vmul.f32 %v1360, 1.442695
  %v1644 = vpow.pop %v1643
  %v1645 = vmul.f32 %v1361, 1.442695
  %v1646 = vpow.pop %v1645
  %v1647 = vmul.f32 %v1362, 1.442695
  %v1648 = vpow.pop %v1647
  %v1649 = vmul.f32 %v1363, 1.442695
  %v1650 = vpow.pop %v1649
  %v1651 = vmul.f32 %v1364, 1.442695
  %v1652 = vpow.pop %v1651
  %v1653 = vmul.f32 %v1077, %v1366
  %v1654 = vmul.f32 %v1078, %v1368
  %v1655 = vmul.f32 %v1079, %v1370
  %v1656 = vmul.f32 %v1080, %v1372
  %v1657 = vmul.f32 %v1081, %v1374
  %v1658 = vmul.f32 %v1082, %v1376
  %v1659 = vmul.f32 %v1083, %v1378
  %v1660 = vmul.f32 %v1084, %v1380
  %v1661 = vmul.f32 %v1085, %v1382
  %v1662 = vmul.f32 %v1086, %v1384
  %v1663 = vmul.f32 %v1087, %v1386
  %v1664 = vmul.f32 %v1088, %v1388
  %v1665 = vmul.f32 %v1089, %v1390
  %v1666 = vmul.f32 %v1090, %v1392
  %v1667 = vmul.f32 %v1091, %v1394
  %v1668 = vmul.f32 %v1092, %v1396
  %v1669 = vmul.f32 %v1093, %v1398
  %v1670 = vmul.f32 %v1094, %v1400
  %v1671 = vmul.f32 %v1095, %v1402
  %v1672 = vmul.f32 %v1096, %v1404
  %v1673 = vmul.f32 %v1097, %v1406
  %v1674 = vmul.f32 %v1098, %v1408
  %v1675 = vmul.f32 %v1099, %v1410
  %v1676 = vmul.f32 %v1100, %v1412
  %v1677 = vmul.f32 %v1101, %v1414
  %v1678 = vmul.f32 %v1102, %v1416
  %v1679 = vmul.f32 %v1103, %v1418
  %v1680 = vmul.f32 %v1104, %v1420
  %v1681 = vmul.f32 %v1105, %v1422
  %v1682 = vmul.f32 %v1106, %v1424
  %v1683 = vmul.f32 %v1107, %v1426
  %v1684 = vmul.f32 %v1108, %v1428
  %v1685 = vmul.f32 %v1109, %v1430
  %v1686 = vmul.f32 %v1110, %v1432
  %v1687 = vmul.f32 %v1111, %v1434
  %v1688 = vmul.f32 %v1112, %v1436
  %v1689 = vmul.f32 %v1113, %v1438
  %v1690 = vmul.f32 %v1114, %v1440
  %v1691 = vmul.f32 %v1115, %v1442
  %v1692 = vmul.f32 %v1116, %v1444
  %v1693 = vmul.f32 %v1117, %v1446
  %v1694 = vmul.f32 %v1118, %v1448
  %v1695 = vmul.f32 %v1119, %v1450
  %v1696 = vmul.f32 %v1120, %v1452
  %v1697 = vmul.f32 %v1121, %v1454
  %v1698 = vmul.f32 %v1122, %v1456
  %v1699 = vmul.f32 %v1123, %v1458
  %v1700 = vmul.f32 %v1124, %v1460
  %v1701 = vmul.f32 %v1125, %v1462
  %v1702 = vmul.f32 %v1126, %v1464
  %v1703 = vmul.f32 %v1127, %v1466
  %v1704 = vmul.f32 %v1128, %v1468
  %v1705 = vmul.f32 %v1129, %v1470
  %v1706 = vmul.f32 %v1130, %v1472
  %v1707 = vmul.f32 %v1131, %v1474
  %v1708 = vmul.f32 %v1132, %v1476
  %v1709 = vmul.f32 %v1133, %v1478
  %v1710 = vmul.f32 %v1134, %v1480
  %v1711 = vmul.f32 %v1135, %v1482
  %v1712 = vmul.f32 %v1136, %v1484
  %v1713 = vmul.f32 %v1137, %v1486
  %v1714 = vmul.f32 %v1138, %v1488
  %v1715 = vmul.f32 %v1139, %v1490
  %v1716 = vmul.f32 %v1140, %v1492
  %v1717 = vmul.f32 %v1141, %v1494
  %v1718 = vmul.f32 %v1142, %v1496
  %v1719 = vmul.f32 %v1143, %v1498
  %v1720 = vmul.f32 %v1144, %v1500
  %v1721 = vmul.f32 %v1145, %v1502
  %v1722 = vmul.f32 %v1146, %v1504
  %v1723 = vmul.f32 %v1147, %v1506
  %v1724 = vmul.f32 %v1148, %v1508
  %v1725 = vmul.f32 %v1149, %v1510
  %v1726 = vmul.f32 %v1150, %v1512
  %v1727 = vmul.f32 %v1151, %v1514
  %v1728 = vmul.f32 %v1152, %v1516
  %v1729 = vmul.f32 %v1153, %v1518
  %v1730 = vmul.f32 %v1154, %v1520
  %v1731 = vmul.f32 %v1155, %v1522
  %v1732 = vmul.f32 %v1156, %v1524
  %v1733 = vmul.f32 %v1157, %v1526
  %v1734 = vmul.f32 %v1158, %v1528
  %v1735 = vmul.f32 %v1159, %v1530
  %v1736 = vmul.f32 %v1160, %v1532
  %v1737 = vmul.f32 %v1161, %v1534
  %v1738 = vmul.f32 %v1162, %v1536
  %v1739 = vmul.f32 %v1163, %v1538
  %v1740 = vmul.f32 %v1164, %v1540
  %v1741 = vmul.f32 %v1165, %v1542
  %v1742 = vmul.f32 %v1166, %v1544
  %v1743 = vmul.f32 %v1167, %v1546
  %v1744 = vmul.f32 %v1168, %v1548
  %v1745 = vmul.f32 %v1169, %v1550
  %v1746 = vmul.f32 %v1170, %v1552
  %v1747 = vmul.f32 %v1171, %v1554
  %v1748 = vmul.f32 %v1172, %v1556
  %v1749 = vmul.f32 %v1173, %v1558
  %v1750 = vmul.f32 %v1174, %v1560
  %v1751 = vmul.f32 %v1175, %v1562
  %v1752 = vmul.f32 %v1176, %v1564
  %v1753 = vmul.f32 %v1177, %v1566
  %v1754 = vmul.f32 %v1178, %v1568
  %v1755 = vmul.f32 %v1179, %v1570
  %v1756 = vmul.f32 %v1180, %v1572
  %v1757 = vmul.f32 %v1181, %v1574
  %v1758 = vmul.f32 %v1182, %v1576
  %v1759 = vmul.f32 %v1183, %v1578
  %v1760 = vmul.f32 %v1184, %v1580
  %v1761 = vmul.f32 %v1185, %v1582
  %v1762 = vmul.f32 %v1186, %v1584
  %v1763 = vmul.f32 %v1187, %v1586
  %v1764 = vmul.f32 %v1188, %v1588
  %v1765 = vmul.f32 %v1189, %v1590
  %v1766 = vmul.f32 %v1190, %v1592
  %v1767 = vmul.f32 %v1191, %v1594
  %v1768 = vmul.f32 %v1192, %v1596
  %v1769 = vmul.f32 %v1193, %v1598
  %v1770 = vmul.f32 %v1194, %v1600
  %v1771 = vmul.f32 %v1195, %v1602
  %v1772 = vmul.f32 %v1196, %v1604
  %v1773 = vmul.f32 %v1197, %v1606
  %v1774 = vmul.f32 %v1198, %v1608
  %v1775 = vmul.f32 %v1199, %v1610
  %v1776 = vmul.f32 %v1200, %v1612
  %v1777 = vmul.f32 %v1201, %v1614
  %v1778 = vmul.f32 %v1202, %v1616
  %v1779 = vmul.f32 %v1203, %v1618
  %v1780 = vmul.f32 %v1204, %v1620
  %v1781 = vmul.f32 %v1205, %v1622
  %v1782 = vmul.f32 %v1206, %v1624
  %v1783 = vmul.f32 %v1207, %v1626
  %v1784 = vmul.f32 %v1208, %v1628
  %v1785 = vmul.f32 %v1209, %v1630
  %v1786 = vmul.f32 %v1210, %v1632
  %v1787 = vmul.f32 %v1211, %v1634
  %v1788 = vmul.f32 %v1212, %v1636
  %v1789 = vmul.f32 %v1213, %v1638
  %v1790 = vmul.f32 %v1214, %v1640
  %v1791 = vmul.f32 %v1215, %v1642
  %v1792 = vmul.f32 %v1216, %v1644
  %v1793 = vmul.f32 %v1217, %v1646
  %v1794 = vmul.f32 %v1218, %v1648
  %v1795 = vmul.f32 %v1219, %v1650
  %v1796 = vmul.f32 %v1220, %v1652
  %1797 = vst [vmem:[%s3] sm:$0xff] %v1653
  %1798 = vst [vmem:[%s3 + $0x8] sm:$0xff] %v1654
  %1799 = vst [vmem:[%s3 + $0x10] sm:$0xff] %v1655
  %1800 = vst [vmem:[%s3 + $0x18] sm:$0xff] %v1656
  %1801 = vst [vmem:[%s3 + $0x20] sm:$0xff] %v1657
  %1802 = vst [vmem:[%s3 + $0x28] sm:$0xff] %v1658
  %1803 = vst [vmem:[%s3 + $0x30] sm:$0xff] %v1659
  %1804 = vst [vmem:[%s3 + $0x38] sm:$0xff] %v1660
  %1805 = vst [vmem:[%s3 + $0x40] sm:$0xff] %v1661
  %1806 = vst [vmem:[%s3 + $0x48] sm:$0xff] %v1662
  %1807 = vst [vmem:[%s3 + $0x50] sm:$0xff] %v1663
  %1808 = vst [vmem:[%s3 + $0x58] sm:$0xff] %v1664
  %1809 = vst [vmem:[%s3 + $0x60] sm:$0xff] %v1665
  %1810 = vst [vmem:[%s3 + $0x68] sm:$0xff] %v1666
  %1811 = vst [vmem:[%s3 + $0x70] sm:$0xff] %v1667
  %1812 = vst [vmem:[%s3 + $0x78] sm:$0xff] %v1668
  %1813 = vst [vmem:[%s3 + $0x80] sm:$0xff] %v1669
  %1814 = vst [vmem:[%s3 + $0x88] sm:$0xff] %v1670
  %1815 = vst [vmem:[%s3 + $0x90] sm:$0xff] %v1671
  %1816 = vst [vmem:[%s3 + $0x98] sm:$0xff] %v1672
  %1817 = vst [vmem:[%s3 + $0xa0] sm:$0xff] %v1673
  %1818 = vst [vmem:[%s3 + $0xa8] sm:$0xff] %v1674
  %1819 = vst [vmem:[%s3 + $0xb0] sm:$0xff] %v1675
  %1820 = vst [vmem:[%s3 + $0xb8] sm:$0xff] %v1676
  %1821 = vst [vmem:[%s3 + $0xc0] sm:$0xff] %v1677
  %1822 = vst [vmem:[%s3 + $0xc8] sm:$0xff] %v1678
  %1823 = vst [vmem:[%s3 + $0xd0] sm:$0xff] %v1679
  %1824 = vst [vmem:[%s3 + $0xd8] sm:$0xff] %v1680
  %1825 = vst [vmem:[%s3 + $0xe0] sm:$0xff] %v1681
  %1826 = vst [vmem:[%s3 + $0xe8] sm:$0xff] %v1682
  %1827 = vst [vmem:[%s3 + $0xf0] sm:$0xff] %v1683
  %1828 = vst [vmem:[%s3 + $0xf8] sm:$0xff] %v1684
  %1829 = vst [vmem:[%s3 + $0x100] sm:$0xff] %v1685
  %1830 = vst [vmem:[%s3 + $0x108] sm:$0xff] %v1686
  %1831 = vst [vmem:[%s3 + $0x110] sm:$0xff] %v1687
  %1832 = vst [vmem:[%s3 + $0x118] sm:$0xff] %v1688
  %1833 = vst [vmem:[%s3 + $0x120] sm:$0xff] %v1689
  %1834 = vst [vmem:[%s3 + $0x128] sm:$0xff] %v1690
  %1835 = vst [vmem:[%s3 + $0x130] sm:$0xff] %v1691
  %1836 = vst [vmem:[%s3 + $0x138] sm:$0xff] %v1692
  %1837 = vst [vmem:[%s3 + $0x140] sm:$0xff] %v1693
  %1838 = vst [vmem:[%s3 + $0x148] sm:$0xff] %v1694
  %1839 = vst [vmem:[%s3 + $0x150] sm:$0xff] %v1695
  %1840 = vst [vmem:[%s3 + $0x158] sm:$0xff] %v1696
  %1841 = vst [vmem:[%s3 + $0x160] sm:$0xff] %v1697
  %1842 = vst [vmem:[%s3 + $0x168] sm:$0xff] %v1698
  %1843 = vst [vmem:[%s3 + $0x170] sm:$0xff] %v1699
  %1844 = vst [vmem:[%s3 + $0x178] sm:$0xff] %v1700
  %1845 = vst [vmem:[%s3 + $0x180] sm:$0xff] %v1701
  %1846 = vst [vmem:[%s3 + $0x188] sm:$0xff] %v1702
  %1847 = vst [vmem:[%s3 + $0x190] sm:$0xff] %v1703
  %1848 = vst [vmem:[%s3 + $0x198] sm:$0xff] %v1704
  %1849 = vst [vmem:[%s3 + $0x1a0] sm:$0xff] %v1705
  %1850 = vst [vmem:[%s3 + $0x1a8] sm:$0xff] %v1706
  %1851 = vst [vmem:[%s3 + $0x1b0] sm:$0xff] %v1707
  %1852 = vst [vmem:[%s3 + $0x1b8] sm:$0xff] %v1708
  %1853 = vst [vmem:[%s3 + $0x1c0] sm:$0xff] %v1709
  %1854 = vst [vmem:[%s3 + $0x1c8] sm:$0xff] %v1710
  %1855 = vst [vmem:[%s3 + $0x1d0] sm:$0xff] %v1711
  %1856 = vst [vmem:[%s3 + $0x1d8] sm:$0xff] %v1712
  %1857 = vst [vmem:[%s3 + $0x1e0] sm:$0xff] %v1713
  %1858 = vst [vmem:[%s3 + $0x1e8] sm:$0xff] %v1714
  %1859 = vst [vmem:[%s3 + $0x1f0] sm:$0xff] %v1715
  %1860 = vst [vmem:[%s3 + $0x1f8] sm:$0xff] %v1716
  %1861 = vst [vmem:[%s3 + $0x200] sm:$0xff] %v1717
  %1862 = vst [vmem:[%s3 + $0x208] sm:$0xff] %v1718
  %1863 = vst [vmem:[%s3 + $0x210] sm:$0xff] %v1719
  %1864 = vst [vmem:[%s3 + $0x218] sm:$0xff] %v1720
  %1865 = vst [vmem:[%s3 + $0x220] sm:$0xff] %v1721
  %1866 = vst [vmem:[%s3 + $0x228] sm:$0xff] %v1722
  %1867 = vst [vmem:[%s3 + $0x230] sm:$0xff] %v1723
  %1868 = vst [vmem:[%s3 + $0x238] sm:$0xff] %v1724
  %1869 = vst [vmem:[%s3 + $0x240] sm:$0xff] %v1725
  %1870 = vst [vmem:[%s3 + $0x248] sm:$0xff] %v1726
  %1871 = vst [vmem:[%s3 + $0x250] sm:$0xff] %v1727
  %1872 = vst [vmem:[%s3 + $0x258] sm:$0xff] %v1728
  %1873 = vst [vmem:[%s3 + $0x260] sm:$0xff] %v1729
  %1874 = vst [vmem:[%s3 + $0x268] sm:$0xff] %v1730
  %1875 = vst [vmem:[%s3 + $0x270] sm:$0xff] %v1731
  %1876 = vst [vmem:[%s3 + $0x278] sm:$0xff] %v1732
  %1877 = vst [vmem:[%s3 + $0x280] sm:$0xff] %v1733
  %1878 = vst [vmem:[%s3 + $0x288] sm:$0xff] %v1734
  %1879 = vst [vmem:[%s3 + $0x290] sm:$0xff] %v1735
  %1880 = vst [vmem:[%s3 + $0x298] sm:$0xff] %v1736
  %1881 = vst [vmem:[%s3 + $0x2a0] sm:$0xff] %v1737
  %1882 = vst [vmem:[%s3 + $0x2a8] sm:$0xff] %v1738
  %1883 = vst [vmem:[%s3 + $0x2b0] sm:$0xff] %v1739
  %1884 = vst [vmem:[%s3 + $0x2b8] sm:$0xff] %v1740
  %1885 = vst [vmem:[%s3 + $0x2c0] sm:$0xff] %v1741
  %1886 = vst [vmem:[%s3 + $0x2c8] sm:$0xff] %v1742
  %1887 = vst [vmem:[%s3 + $0x2d0] sm:$0xff] %v1743
  %1888 = vst [vmem:[%s3 + $0x2d8] sm:$0xff] %v1744
  %1889 = vst [vmem:[%s3 + $0x2e0] sm:$0xff] %v1745
  %1890 = vst [vmem:[%s3 + $0x2e8] sm:$0xff] %v1746
  %1891 = vst [vmem:[%s3 + $0x2f0] sm:$0xff] %v1747
  %1892 = vst [vmem:[%s3 + $0x2f8] sm:$0xff] %v1748
  %1893 = vst [vmem:[%s3 + $0x300] sm:$0xff] %v1749
  %1894 = vst [vmem:[%s3 + $0x308] sm:$0xff] %v1750
  %1895 = vst [vmem:[%s3 + $0x310] sm:$0xff] %v1751
  %1896 = vst [vmem:[%s3 + $0x318] sm:$0xff] %v1752
  %1897 = vst [vmem:[%s3 + $0x320] sm:$0xff] %v1753
  %1898 = vst [vmem:[%s3 + $0x328] sm:$0xff] %v1754
  %1899 = vst [vmem:[%s3 + $0x330] sm:$0xff] %v1755
  %1900 = vst [vmem:[%s3 + $0x338] sm:$0xff] %v1756
  %1901 = vst [vmem:[%s3 + $0x340] sm:$0xff] %v1757
  %1902 = vst [vmem:[%s3 + $0x348] sm:$0xff] %v1758
  %1903 = vst [vmem:[%s3 + $0x350] sm:$0xff] %v1759
  %1904 = vst [vmem:[%s3 + $0x358] sm:$0xff] %v1760
  %1905 = vst [vmem:[%s3 + $0x360] sm:$0xff] %v1761
  %1906 = vst [vmem:[%s3 + $0x368] sm:$0xff] %v1762
  %1907 = vst [vmem:[%s3 + $0x370] sm:$0xff] %v1763
  %1908 = vst [vmem:[%s3 + $0x378] sm:$0xff] %v1764
  %1909 = vst [vmem:[%s3 + $0x380] sm:$0xff] %v1765
  %1910 = vst [vmem:[%s3 + $0x388] sm:$0xff] %v1766
  %1911 = vst [vmem:[%s3 + $0x390] sm:$0xff] %v1767
  %1912 = vst [vmem:[%s3 + $0x398] sm:$0xff] %v1768
  %1913 = vst [vmem:[%s3 + $0x3a0] sm:$0xff] %v1769
  %1914 = vst [vmem:[%s3 + $0x3a8] sm:$0xff] %v1770
  %1915 = vst [vmem:[%s3 + $0x3b0] sm:$0xff] %v1771
  %1916 = vst [vmem:[%s3 + $0x3b8] sm:$0xff] %v1772
  %1917 = vst [vmem:[%s3 + $0x3c0] sm:$0xff] %v1773
  %1918 = vst [vmem:[%s3 + $0x3c8] sm:$0xff] %v1774
  %1919 = vst [vmem:[%s3 + $0x3d0] sm:$0xff] %v1775
  %1920 = vst [vmem:[%s3 + $0x3d8] sm:$0xff] %v1776
  %1921 = vst [vmem:[%s3 + $0x3e0] sm:$0xff] %v1777
  %1922 = vst [vmem:[%s3 + $0x3e8] sm:$0xff] %v1778
  %1923 = vst [vmem:[%s3 + $0x3f0] sm:$0xff] %v1779
  %1924 = vst [vmem:[%s3 + $0x3f8] sm:$0xff] %v1780
  %1925 = vst [vmem:[%s3 + $0x400] sm:$0xff] %v1781
  %1926 = vst [vmem:[%s3 + $0x408] sm:$0xff] %v1782
  %1927 = vst [vmem:[%s3 + $0x410] sm:$0xff] %v1783
  %1928 = vst [vmem:[%s3 + $0x418] sm:$0xff] %v1784
  %1929 = vst [vmem:[%s3 + $0x420] sm:$0xff] %v1785
  %1930 = vst [vmem:[%s3 + $0x428] sm:$0xff] %v1786
  %1931 = vst [vmem:[%s3 + $0x430] sm:$0xff] %v1787
  %1932 = vst [vmem:[%s3 + $0x438] sm:$0xff] %v1788
  %1933 = vst [vmem:[%s3 + $0x440] sm:$0xff] %v1789
  %1934 = vst [vmem:[%s3 + $0x448] sm:$0xff] %v1790
  %1935 = vst [vmem:[%s3 + $0x450] sm:$0xff] %v1791
  %1936 = vst [vmem:[%s3 + $0x458] sm:$0xff] %v1792
  %1937 = vst [vmem:[%s3 + $0x460] sm:$0xff] %v1793
  %1938 = vst [vmem:[%s3 + $0x468] sm:$0xff] %v1794
  %1939 = vst [vmem:[%s3 + $0x470] sm:$0xff] %v1795
  %1940 = vst [vmem:[%s3 + $0x478] sm:$0xff] %v1796
  // Predicated region
  $region10: #{tpu_custom_call.1} parent=0 // pred_check
    _
  $region11: #{tpu_custom_call.1} parent=0 // pred_check_branch
    %1942 = sbr.rel (0) target = $region13
  $region12: #{tpu_custom_call.1} parent=0 // pred_region
    _
  $region13: #{tpu_custom_call.1} parent=0 // pred_fallthru
    _
  // Predicated region
  $region14: #{tpu_custom_call.1} parent=0 // pred_check
    _
  $region15: #{tpu_custom_call.1} parent=0 // pred_check_branch
    %1944 = sbr.rel (0) target = $region17
  $region16: #{tpu_custom_call.1} parent=0 // pred_region
    _
  $region17: #{tpu_custom_call.1} parent=0 // pred_fallthru
    _

</llo_original>
